<compile_context>
chip_gen: v6e
topology: v6e:2x2x1
jax: 0.10.0
libtpu: 0.0.40
codegen_flags: <defaults>
</compile_context>

<pallas_src>
import functools

import numpy as np
import jax
import jax.numpy as jnp
from jax.experimental import pallas as pl
from jax.experimental.pallas import tpu as pltpu


# Tap order (dy, dx) matches the weight reshape (O, I, 3, 3) -> (O, 9*I).
_TAPS = tuple((dy, dx) for dy in (-1, 0, 1) for dx in (-1, 0, 1))


# ----------------------------------------------------------------------------
# Fused Pallas kernel: full Joint_Model forward for one grid step.
# Layout: images are (C, L) with L = Nb*H*W (channels on sublanes, batch+space
# stacked on lanes).  Weights are (Cout, 9*C); biases are (Cout, 1).
# ----------------------------------------------------------------------------
def joint_model_kernel(first_ref, second_ref, mask_ref,
                       g1w_ref, g1b_ref, secw_ref, secb_ref, dgw_ref, dgb_ref,
                       g1s_ref, dg21_ref, g12_ref,
                       stack_ref, *, C, W, L):

    def build_stacked(x):
        # Write the 9 shifted + border-masked taps of x (C, L) into the
        # (9C, L) scratch; roll -> mask -> store per tap so only one tap is
        # live in vregs at a time.
        for t, (dy, dx) in enumerate(_TAPS):
            s = dy * W + dx                            # flat source offset
            rows = pl.ds(t * C, C)
            if s == 0:
                stack_ref[rows, :] = x                 # center tap: always valid
            else:
                rolled = pltpu.roll(x, (-s) % L, 1)    # out[f] = x[f + s]
                stack_ref[rows, :] = rolled * mask_ref[rows, :]
        return stack_ref[...]                          # (9C, L)

    def conv(stacked, w, b):                           # one MXU matmul per conv
        return jnp.dot(w, stacked, preferred_element_type=jnp.float32) + b

    g1w = g1w_ref[...]
    g1b = g1b_ref[...]

    first = first_ref[0]                               # (C, L)
    second = second_ref[0]                             # (C, L)

    # generator1(first) — intermediate only.
    gen1_first = jnp.tanh(conv(build_stacked(first), g1w, g1b))

    # generator1(second) & generator2(second), fused on output channels.
    sec = jnp.tanh(conv(build_stacked(second), secw_ref[...], secb_ref[...]))
    g1s_ref[0] = sec[:C]                               # gen1_out_second
    gen2_second = sec[C:]                              # intermediate

    # discriminator(gen1_first) & generator2(gen1_first), fused.
    dg = conv(build_stacked(gen1_first), dgw_ref[...], dgb_ref[...])
    row = jax.lax.broadcasted_iota(jnp.int32, dg.shape, 0)
    dg21_ref[0] = jnp.where(row == 0, jax.nn.sigmoid(dg), jnp.tanh(dg))

    # generator1(gen2_second).
    g12_ref[0] = jnp.tanh(conv(build_stacked(gen2_second), g1w, g1b))


# ----------------------------------------------------------------------------
# Wrapper: layout prep + single pallas_call
# ----------------------------------------------------------------------------
def joint_model_forward(params, first_input, second_input):
    N, C, H, W = first_input.shape
    HW = H * W
    f32 = jnp.float32

    # Pack the batch onto the lane axis: each grid step handles `nb` images as
    # a (C, nb*HW) slab.  Keep >=2 parallel grid steps when possible (v7x has
    # two TensorCores) and cap per-step lane width so the (9C, L) scratch plus
    # double-buffered blocks stay well inside VMEM if shapes are scaled up.
    max_lanes = 32768
    nb = max(1, min(N // 2 if N >= 2 else 1, max(1, max_lanes // HW)))
    while N % nb != 0:
        nb -= 1
    num_steps = N // nb
    L = nb * HW

    def to_steps(x):      # (N, C, H, W) -> (steps, C, nb*HW), images on lanes
        x = x.reshape(num_steps, nb, C, HW)
        return jnp.transpose(x, (0, 2, 1, 3)).reshape(num_steps, C, L).astype(f32)

    def from_steps(y, co):  # (steps, co, nb*HW) -> (N, co, H, W)
        y = y.reshape(num_steps, co, nb, HW)
        return jnp.transpose(y, (0, 2, 1, 3)).reshape(N, co, H, W)

    def flat_w(w):        # (O, I, 3, 3) -> (O, 9*I); column index = tap*I + i
        o = w.shape[0]
        return jnp.transpose(w, (0, 2, 3, 1)).reshape(o, -1).astype(f32)

    first = to_steps(first_input)
    second = to_steps(second_input)

    g1w = flat_w(params["g1_w"])
    g2w = flat_w(params["g2_w"])
    dw = flat_w(params["d_w"])
    g1b = params["g1_b"].reshape(C, 1).astype(f32)
    g2b = params["g2_b"].reshape(C, 1).astype(f32)
    db = params["d_b"].reshape(1, 1).astype(f32)

    sec_w = jnp.concatenate([g1w, g2w], axis=0)        # (2C, 9C)
    sec_b = jnp.concatenate([g1b, g2b], axis=0)        # (2C, 1)
    dg_w = jnp.concatenate([dw, g2w], axis=0)          # (1+C, 9C)
    dg_b = jnp.concatenate([db, g2b], axis=0)          # (1+C, 1)

    # Border-validity masks for the 9 taps, built once host-side from
    # per-image coordinates (so rolls never bleed across stacked images) and
    # pre-broadcast to C sublanes: shape (9C, L).
    pos = np.arange(L) % HW
    rr = pos // W
    cc = pos % W
    rows = []
    for dy, dx in _TAPS:
        valid = ((rr + dy >= 0) & (rr + dy < H) &
                 (cc + dx >= 0) & (cc + dx < W)).astype(np.float32)
        rows.append(np.broadcast_to(valid[None, :], (C, L)))
    mask9c = jnp.asarray(np.concatenate(rows, axis=0))  # (9C, L)

    const2d = lambda shape: pl.BlockSpec(shape, lambda n: (0, 0))
    batched = lambda co: pl.BlockSpec((1, co, L), lambda n: (n, 0, 0))

    out_shapes = (
        jax.ShapeDtypeStruct((num_steps, C, L), f32),      # gen1_out_second
        jax.ShapeDtypeStruct((num_steps, 1 + C, L), f32),  # [disc ; gen2(gen1(first))]
        jax.ShapeDtypeStruct((num_steps, C, L), f32),      # gen1(gen2(second))
    )

    g1s, dg21, g12 = pl.pallas_call(
        functools.partial(joint_model_kernel, C=C, W=W, L=L),
        out_shape=out_shapes,
        grid=(num_steps,),
        in_specs=[
            batched(C),                     # first
            batched(C),                     # second
            const2d((9 * C, L)),            # tap masks
            const2d((C, 9 * C)),            # g1 weight (used twice)
            const2d((C, 1)),                # g1 bias
            const2d((2 * C, 9 * C)),        # [g1; g2] fused weight
            const2d((2 * C, 1)),            # [g1; g2] fused bias
            const2d((1 + C, 9 * C)),        # [disc; g2] fused weight
            const2d((1 + C, 1)),            # [disc; g2] fused bias
        ],
        out_specs=[
            batched(C),
            batched(1 + C),
            batched(C),
        ],
        scratch_shapes=[pltpu.VMEM((9 * C, L), f32)],
        compiler_params=pltpu.CompilerParams(
            dimension_semantics=("parallel",)),
    )(first, second, mask9c, g1w, g1b, sec_w, sec_b, dg_w, dg_b)

    discriminator_output = from_steps(dg21[:, :1, :], 1)
    gen2_out_gen1 = from_steps(dg21[:, 1:, :], C)
    gen1_out_second = from_steps(g1s, C)
    gen1_out_gen2 = from_steps(g12, C)
    return (discriminator_output, gen1_out_second, gen2_out_gen1, gen1_out_gen2)


# ----------------------------------------------------------------------------
# Pure-JAX reference (for correctness check)
# ----------------------------------------------------------------------------
def conv3x3_same_ref(x_nchw, w_oihw, bias, activation):
    out = jax.lax.conv_general_dilated(
        x_nchw.astype(jnp.float32), w_oihw.astype(jnp.float32),
        window_strides=(1, 1), padding="SAME",
        dimension_numbers=("NCHW", "OIHW", "NCHW"))
    out = out + bias.reshape(1, -1, 1, 1)
    if activation == "tanh":
        out = jnp.tanh(out)
    elif activation == "sigmoid":
        out = jax.nn.sigmoid(out)
    return out


if __name__ == "__main__":
    # Small shapes: batch=2, channels=4, spatial=16x16 (NCHW, like PyTorch).
    N, C, H, W = 2, 4, 16, 16

    key = jax.random.PRNGKey(0)
    k_in1, k_in2, k_g1w, k_g1b, k_g2w, k_g2b, k_dw, k_db = jax.random.split(key, 8)

    first_input = jax.random.normal(k_in1, (N, C, H, W), jnp.float32)
    second_input = jax.random.normal(k_in2, (N, C, H, W), jnp.float32)

    params = {
        # generator1: Conv2d(C, C, 3, padding=1)
        "g1_w": 0.1 * jax.random.normal(k_g1w, (C, C, 3, 3), jnp.float32),
        "g1_b": 0.1 * jax.random.normal(k_g1b, (C,), jnp.float32),
        # generator2: Conv2d(C, C, 3, padding=1)
        "g2_w": 0.1 * jax.random.normal(k_g2w, (C, C, 3, 3), jnp.float32),
        "g2_b": 0.1 * jax.random.normal(k_g2b, (C,), jnp.float32),
        # discriminator: Conv2d(C, 1, 3, padding=1)
        "d_w": 0.1 * jax.random.normal(k_dw, (1, C, 3, 3), jnp.float32),
        "d_b": 0.1 * jax.random.normal(k_db, (1,), jnp.float32),
    }

    fwd = jax.jit(joint_model_forward)
    outs = jax.block_until_ready(fwd(params, first_input, second_input))

    # Reference check of the full forward composition.
    def ref_forward(p, a, b):
        g1 = lambda x: conv3x3_same_ref(x, p["g1_w"], p["g1_b"], "tanh")
        g2 = lambda x: conv3x3_same_ref(x, p["g2_w"], p["g2_b"], "tanh")
        d = lambda x: conv3x3_same_ref(x, p["d_w"], p["d_b"], "sigmoid")
        o1 = g1(a)
        return (d(o1), g1(b), g2(o1), g1(g2(b)))

    refs = jax.block_until_ready(ref_forward(params, first_input, second_input))

    expected_shapes = [(N, 1, H, W), (N, C, H, W), (N, C, H, W), (N, C, H, W)]
    for o, r, s in zip(outs, refs, expected_shapes):
        assert o.shape == s, (o.shape, s)
        assert jnp.max(jnp.abs(o - r)) < 1e-3

    print("KERNEL_OK")
</pallas_src>

<mosaic_0001>
module attributes {stable_mosaic.version = 11 : i64} {
  func.func @joint_model_kernel(%arg0: i32, %arg1: memref<1x4x256xf32, #tpu.memory_space<vmem>>, %arg2: memref<1x4x256xf32, #tpu.memory_space<vmem>>, %arg3: memref<36x256xf32, #tpu.memory_space<vmem>>, %arg4: memref<4x36xf32, #tpu.memory_space<vmem>>, %arg5: memref<4x1xf32, #tpu.memory_space<vmem>>, %arg6: memref<8x36xf32, #tpu.memory_space<vmem>>, %arg7: memref<8x1xf32, #tpu.memory_space<vmem>>, %arg8: memref<5x36xf32, #tpu.memory_space<vmem>>, %arg9: memref<5x1xf32, #tpu.memory_space<vmem>>, %arg10: memref<1x4x256xf32, #tpu.memory_space<vmem>>, %arg11: memref<1x5x256xf32, #tpu.memory_space<vmem>>, %arg12: memref<1x4x256xf32, #tpu.memory_space<vmem>>, %arg13: memref<36x256xf32, #tpu.memory_space<vmem>>) attributes {dimension_semantics = [#tpu.dimension_semantics<parallel>], iteration_bounds = array<i64: 2>, scalar_prefetch = 0 : i64, scratch_operands = 1 : i64, tpu.core_type = #tpu.core_type<tc>, window_params = [{transform_indices = @transform_0, window_bounds = array<i64: 1, 4, 256>}, {transform_indices = @transform_1, window_bounds = array<i64: 1, 4, 256>}, {pipeline_mode = #tpu.pipeline_mode<synchronous>, transform_indices = @transform_2, window_bounds = array<i64: 36, 256>}, {pipeline_mode = #tpu.pipeline_mode<synchronous>, transform_indices = @transform_3, window_bounds = array<i64: 4, 36>}, {pipeline_mode = #tpu.pipeline_mode<synchronous>, transform_indices = @transform_4, window_bounds = array<i64: 4, 1>}, {pipeline_mode = #tpu.pipeline_mode<synchronous>, transform_indices = @transform_5, window_bounds = array<i64: 8, 36>}, {pipeline_mode = #tpu.pipeline_mode<synchronous>, transform_indices = @transform_6, window_bounds = array<i64: 8, 1>}, {pipeline_mode = #tpu.pipeline_mode<synchronous>, transform_indices = @transform_7, window_bounds = array<i64: 5, 36>}, {pipeline_mode = #tpu.pipeline_mode<synchronous>, transform_indices = @transform_8, window_bounds = array<i64: 5, 1>}, {transform_indices = @transform_9, window_bounds = array<i64: 1, 4, 256>}, {transform_indices = @transform_10, window_bounds = array<i64: 1, 5, 256>}, {transform_indices = @transform_11, window_bounds = array<i64: 1, 4, 256>}]} {
    %c0 = arith.constant 0 : index
    %c0_0 = arith.constant 0 : index
    %0 = vector.load %arg4[%c0, %c0_0] : memref<4x36xf32, #tpu.memory_space<vmem>>, vector<4x36xf32>
    %c0_1 = arith.constant 0 : index
    %c0_2 = arith.constant 0 : index
    %1 = vector.load %arg5[%c0_1, %c0_2] : memref<4x1xf32, #tpu.memory_space<vmem>>, vector<4x1xf32>
    %c0_3 = arith.constant 0 : index
    %c0_4 = arith.constant 0 : index
    %c0_5 = arith.constant 0 : index
    %2 = vector.load %arg1[%c0_3, %c0_4, %c0_5] : memref<1x4x256xf32, #tpu.memory_space<vmem>>, vector<1x4x256xf32>
    %3 = vector.shape_cast %2 : vector<1x4x256xf32> to vector<4x256xf32>
    %c0_6 = arith.constant 0 : index
    %c0_7 = arith.constant 0 : index
    %c0_8 = arith.constant 0 : index
    %4 = vector.load %arg2[%c0_6, %c0_7, %c0_8] : memref<1x4x256xf32, #tpu.memory_space<vmem>>, vector<1x4x256xf32>
    %5 = vector.shape_cast %4 : vector<1x4x256xf32> to vector<4x256xf32>
    %c17_i32 = arith.constant 17 : i32
    %6 = tpu.dynamic_rotate %3 by %c17_i32 dim 1 : vector<4x256xf32>, i32 -> vector<4x256xf32>
    %c0_9 = arith.constant 0 : index
    %c0_10 = arith.constant 0 : index
    %7 = vector.load %arg3[%c0_9, %c0_10] : memref<36x256xf32, #tpu.memory_space<vmem>>, vector<4x256xf32>
    %8 = arith.mulf %6, %7 : vector<4x256xf32>
    %c0_11 = arith.constant 0 : index
    %c0_12 = arith.constant 0 : index
    %9 = vector.load %arg13[%c0_11, %c0_12] : memref<36x256xf32, #tpu.memory_space<vmem>>, vector<4x256xf32>
    tpu.vector_store %arg13[%c0_11, %c0_12], %8 {strides = array<i32>} : memref<36x256xf32, #tpu.memory_space<vmem>>, vector<4x256xf32>,
    %c16_i32 = arith.constant 16 : i32
    %10 = tpu.dynamic_rotate %3 by %c16_i32 dim 1 : vector<4x256xf32>, i32 -> vector<4x256xf32>
    %c4 = arith.constant 4 : index
    %c0_13 = arith.constant 0 : index
    %11 = vector.load %arg3[%c4, %c0_13] : memref<36x256xf32, #tpu.memory_space<vmem>>, vector<4x256xf32>
    %12 = arith.mulf %10, %11 : vector<4x256xf32>
    %c4_14 = arith.constant 4 : index
    %c0_15 = arith.constant 0 : index
    %13 = vector.load %arg13[%c4_14, %c0_15] : memref<36x256xf32, #tpu.memory_space<vmem>>, vector<4x256xf32>
    tpu.vector_store %arg13[%c4_14, %c0_15], %12 {strides = array<i32>} : memref<36x256xf32, #tpu.memory_space<vmem>>, vector<4x256xf32>,
    %c15_i32 = arith.constant 15 : i32
    %14 = tpu.dynamic_rotate %3 by %c15_i32 dim 1 : vector<4x256xf32>, i32 -> vector<4x256xf32>
    %c8 = arith.constant 8 : index
    %c0_16 = arith.constant 0 : index
    %15 = vector.load %arg3[%c8, %c0_16] : memref<36x256xf32, #tpu.memory_space<vmem>>, vector<4x256xf32>
    %16 = arith.mulf %14, %15 : vector<4x256xf32>
    %c8_17 = arith.constant 8 : index
    %c0_18 = arith.constant 0 : index
    %17 = vector.load %arg13[%c8_17, %c0_18] : memref<36x256xf32, #tpu.memory_space<vmem>>, vector<4x256xf32>
    tpu.vector_store %arg13[%c8_17, %c0_18], %16 {strides = array<i32>} : memref<36x256xf32, #tpu.memory_space<vmem>>, vector<4x256xf32>,
    %c1_i32 = arith.constant 1 : i32
    %18 = tpu.dynamic_rotate %3 by %c1_i32 dim 1 : vector<4x256xf32>, i32 -> vector<4x256xf32>
    %c12 = arith.constant 12 : index
    %c0_19 = arith.constant 0 : index
    %19 = vector.load %arg3[%c12, %c0_19] : memref<36x256xf32, #tpu.memory_space<vmem>>, vector<4x256xf32>
    %20 = arith.mulf %18, %19 : vector<4x256xf32>
    %c12_20 = arith.constant 12 : index
    %c0_21 = arith.constant 0 : index
    %21 = vector.load %arg13[%c12_20, %c0_21] : memref<36x256xf32, #tpu.memory_space<vmem>>, vector<4x256xf32>
    tpu.vector_store %arg13[%c12_20, %c0_21], %20 {strides = array<i32>} : memref<36x256xf32, #tpu.memory_space<vmem>>, vector<4x256xf32>,
    %c16 = arith.constant 16 : index
    %c0_22 = arith.constant 0 : index
    %22 = vector.load %arg13[%c16, %c0_22] : memref<36x256xf32, #tpu.memory_space<vmem>>, vector<4x256xf32>
    tpu.vector_store %arg13[%c16, %c0_22], %3 {strides = array<i32>} : memref<36x256xf32, #tpu.memory_space<vmem>>, vector<4x256xf32>,
    %c255_i32 = arith.constant 255 : i32
    %23 = tpu.dynamic_rotate %3 by %c255_i32 dim 1 : vector<4x256xf32>, i32 -> vector<4x256xf32>
    %c20 = arith.constant 20 : index
    %c0_23 = arith.constant 0 : index
    %24 = vector.load %arg3[%c20, %c0_23] : memref<36x256xf32, #tpu.memory_space<vmem>>, vector<4x256xf32>
    %25 = arith.mulf %23, %24 : vector<4x256xf32>
    %c20_24 = arith.constant 20 : index
    %c0_25 = arith.constant 0 : index
    %26 = vector.load %arg13[%c20_24, %c0_25] : memref<36x256xf32, #tpu.memory_space<vmem>>, vector<4x256xf32>
    tpu.vector_store %arg13[%c20_24, %c0_25], %25 {strides = array<i32>} : memref<36x256xf32, #tpu.memory_space<vmem>>, vector<4x256xf32>,
    %c241_i32 = arith.constant 241 : i32
    %27 = tpu.dynamic_rotate %3 by %c241_i32 dim 1 : vector<4x256xf32>, i32 -> vector<4x256xf32>
    %c24 = arith.constant 24 : index
    %c0_26 = arith.constant 0 : index
    %28 = vector.load %arg3[%c24, %c0_26] : memref<36x256xf32, #tpu.memory_space<vmem>>, vector<4x256xf32>
    %29 = arith.mulf %27, %28 : vector<4x256xf32>
    %c24_27 = arith.constant 24 : index
    %c0_28 = arith.constant 0 : index
    %30 = vector.load %arg13[%c24_27, %c0_28] : memref<36x256xf32, #tpu.memory_space<vmem>>, vector<4x256xf32>
    tpu.vector_store %arg13[%c24_27, %c0_28], %29 {strides = array<i32>} : memref<36x256xf32, #tpu.memory_space<vmem>>, vector<4x256xf32>,
    %c240_i32 = arith.constant 240 : i32
    %31 = tpu.dynamic_rotate %3 by %c240_i32 dim 1 : vector<4x256xf32>, i32 -> vector<4x256xf32>
    %c28 = arith.constant 28 : index
    %c0_29 = arith.constant 0 : index
    %32 = vector.load %arg3[%c28, %c0_29] : memref<36x256xf32, #tpu.memory_space<vmem>>, vector<4x256xf32>
    %33 = arith.mulf %31, %32 : vector<4x256xf32>
    %c28_30 = arith.constant 28 : index
    %c0_31 = arith.constant 0 : index
    %34 = vector.load %arg13[%c28_30, %c0_31] : memref<36x256xf32, #tpu.memory_space<vmem>>, vector<4x256xf32>
    tpu.vector_store %arg13[%c28_30, %c0_31], %33 {strides = array<i32>} : memref<36x256xf32, #tpu.memory_space<vmem>>, vector<4x256xf32>,
    %c239_i32 = arith.constant 239 : i32
    %35 = tpu.dynamic_rotate %3 by %c239_i32 dim 1 : vector<4x256xf32>, i32 -> vector<4x256xf32>
    %c32 = arith.constant 32 : index
    %c0_32 = arith.constant 0 : index
    %36 = vector.load %arg3[%c32, %c0_32] : memref<36x256xf32, #tpu.memory_space<vmem>>, vector<4x256xf32>
    %37 = arith.mulf %35, %36 : vector<4x256xf32>
    %c32_33 = arith.constant 32 : index
    %c0_34 = arith.constant 0 : index
    %38 = vector.load %arg13[%c32_33, %c0_34] : memref<36x256xf32, #tpu.memory_space<vmem>>, vector<4x256xf32>
    tpu.vector_store %arg13[%c32_33, %c0_34], %37 {strides = array<i32>} : memref<36x256xf32, #tpu.memory_space<vmem>>, vector<4x256xf32>,
    %c0_35 = arith.constant 0 : index
    %c0_36 = arith.constant 0 : index
    %39 = vector.load %arg13[%c0_35, %c0_36] : memref<36x256xf32, #tpu.memory_space<vmem>>, vector<36x256xf32>
    %cst = arith.constant dense<0.000000e+00> : vector<4x256xf32>
    %40 = tpu.matmul %0, %39, %cst {dimension_numbers = #tpu.dot_dimension_numbers<[1], [0], [0], [1], [0, 0, 1, 1], [], []>} : vector<4x36xf32>, vector<36x256xf32>, vector<4x256xf32> -> vector<4x256xf32>
    %41 = vector.broadcast %1 : vector<4x1xf32> to vector<4x256xf32>
    %42 = arith.addf %40, %41 : vector<4x256xf32>
    %43 = math.tanh %42 : vector<4x256xf32>
    %c17_i32_37 = arith.constant 17 : i32
    %44 = tpu.dynamic_rotate %5 by %c17_i32_37 dim 1 : vector<4x256xf32>, i32 -> vector<4x256xf32>
    %c0_38 = arith.constant 0 : index
    %c0_39 = arith.constant 0 : index
    %45 = vector.load %arg3[%c0_38, %c0_39] : memref<36x256xf32, #tpu.memory_space<vmem>>, vector<4x256xf32>
    %46 = arith.mulf %44, %45 : vector<4x256xf32>
    %c0_40 = arith.constant 0 : index
    %c0_41 = arith.constant 0 : index
    %47 = vector.load %arg13[%c0_40, %c0_41] : memref<36x256xf32, #tpu.memory_space<vmem>>, vector<4x256xf32>
    tpu.vector_store %arg13[%c0_40, %c0_41], %46 {strides = array<i32>} : memref<36x256xf32, #tpu.memory_space<vmem>>, vector<4x256xf32>,
    %c16_i32_42 = arith.constant 16 : i32
    %48 = tpu.dynamic_rotate %5 by %c16_i32_42 dim 1 : vector<4x256xf32>, i32 -> vector<4x256xf32>
    %c4_43 = arith.constant 4 : index
    %c0_44 = arith.constant 0 : index
    %49 = vector.load %arg3[%c4_43, %c0_44] : memref<36x256xf32, #tpu.memory_space<vmem>>, vector<4x256xf32>
    %50 = arith.mulf %48, %49 : vector<4x256xf32>
    %c4_45 = arith.constant 4 : index
    %c0_46 = arith.constant 0 : index
    %51 = vector.load %arg13[%c4_45, %c0_46] : memref<36x256xf32, #tpu.memory_space<vmem>>, vector<4x256xf32>
    tpu.vector_store %arg13[%c4_45, %c0_46], %50 {strides = array<i32>} : memref<36x256xf32, #tpu.memory_space<vmem>>, vector<4x256xf32>,
    %c15_i32_47 = arith.constant 15 : i32
    %52 = tpu.dynamic_rotate %5 by %c15_i32_47 dim 1 : vector<4x256xf32>, i32 -> vector<4x256xf32>
    %c8_48 = arith.constant 8 : index
    %c0_49 = arith.constant 0 : index
    %53 = vector.load %arg3[%c8_48, %c0_49] : memref<36x256xf32, #tpu.memory_space<vmem>>, vector<4x256xf32>
    %54 = arith.mulf %52, %53 : vector<4x256xf32>
    %c8_50 = arith.constant 8 : index
    %c0_51 = arith.constant 0 : index
    %55 = vector.load %arg13[%c8_50, %c0_51] : memref<36x256xf32, #tpu.memory_space<vmem>>, vector<4x256xf32>
    tpu.vector_store %arg13[%c8_50, %c0_51], %54 {strides = array<i32>} : memref<36x256xf32, #tpu.memory_space<vmem>>, vector<4x256xf32>,
    %c1_i32_52 = arith.constant 1 : i32
    %56 = tpu.dynamic_rotate %5 by %c1_i32_52 dim 1 : vector<4x256xf32>, i32 -> vector<4x256xf32>
    %c12_53 = arith.constant 12 : index
    %c0_54 = arith.constant 0 : index
    %57 = vector.load %arg3[%c12_53, %c0_54] : memref<36x256xf32, #tpu.memory_space<vmem>>, vector<4x256xf32>
    %58 = arith.mulf %56, %57 : vector<4x256xf32>
    %c12_55 = arith.constant 12 : index
    %c0_56 = arith.constant 0 : index
    %59 = vector.load %arg13[%c12_55, %c0_56] : memref<36x256xf32, #tpu.memory_space<vmem>>, vector<4x256xf32>
    tpu.vector_store %arg13[%c12_55, %c0_56], %58 {strides = array<i32>} : memref<36x256xf32, #tpu.memory_space<vmem>>, vector<4x256xf32>,
    %c16_57 = arith.constant 16 : index
    %c0_58 = arith.constant 0 : index
    %60 = vector.load %arg13[%c16_57, %c0_58] : memref<36x256xf32, #tpu.memory_space<vmem>>, vector<4x256xf32>
    tpu.vector_store %arg13[%c16_57, %c0_58], %5 {strides = array<i32>} : memref<36x256xf32, #tpu.memory_space<vmem>>, vector<4x256xf32>,
    %c255_i32_59 = arith.constant 255 : i32
    %61 = tpu.dynamic_rotate %5 by %c255_i32_59 dim 1 : vector<4x256xf32>, i32 -> vector<4x256xf32>
    %c20_60 = arith.constant 20 : index
    %c0_61 = arith.constant 0 : index
    %62 = vector.load %arg3[%c20_60, %c0_61] : memref<36x256xf32, #tpu.memory_space<vmem>>, vector<4x256xf32>
    %63 = arith.mulf %61, %62 : vector<4x256xf32>
    %c20_62 = arith.constant 20 : index
    %c0_63 = arith.constant 0 : index
    %64 = vector.load %arg13[%c20_62, %c0_63] : memref<36x256xf32, #tpu.memory_space<vmem>>, vector<4x256xf32>
    tpu.vector_store %arg13[%c20_62, %c0_63], %63 {strides = array<i32>} : memref<36x256xf32, #tpu.memory_space<vmem>>, vector<4x256xf32>,
    %c241_i32_64 = arith.constant 241 : i32
    %65 = tpu.dynamic_rotate %5 by %c241_i32_64 dim 1 : vector<4x256xf32>, i32 -> vector<4x256xf32>
    %c24_65 = arith.constant 24 : index
    %c0_66 = arith.constant 0 : index
    %66 = vector.load %arg3[%c24_65, %c0_66] : memref<36x256xf32, #tpu.memory_space<vmem>>, vector<4x256xf32>
    %67 = arith.mulf %65, %66 : vector<4x256xf32>
    %c24_67 = arith.constant 24 : index
    %c0_68 = arith.constant 0 : index
    %68 = vector.load %arg13[%c24_67, %c0_68] : memref<36x256xf32, #tpu.memory_space<vmem>>, vector<4x256xf32>
    tpu.vector_store %arg13[%c24_67, %c0_68], %67 {strides = array<i32>} : memref<36x256xf32, #tpu.memory_space<vmem>>, vector<4x256xf32>,
    %c240_i32_69 = arith.constant 240 : i32
    %69 = tpu.dynamic_rotate %5 by %c240_i32_69 dim 1 : vector<4x256xf32>, i32 -> vector<4x256xf32>
    %c28_70 = arith.constant 28 : index
    %c0_71 = arith.constant 0 : index
    %70 = vector.load %arg3[%c28_70, %c0_71] : memref<36x256xf32, #tpu.memory_space<vmem>>, vector<4x256xf32>
    %71 = arith.mulf %69, %70 : vector<4x256xf32>
    %c28_72 = arith.constant 28 : index
    %c0_73 = arith.constant 0 : index
    %72 = vector.load %arg13[%c28_72, %c0_73] : memref<36x256xf32, #tpu.memory_space<vmem>>, vector<4x256xf32>
    tpu.vector_store %arg13[%c28_72, %c0_73], %71 {strides = array<i32>} : memref<36x256xf32, #tpu.memory_space<vmem>>, vector<4x256xf32>,
    %c239_i32_74 = arith.constant 239 : i32
    %73 = tpu.dynamic_rotate %5 by %c239_i32_74 dim 1 : vector<4x256xf32>, i32 -> vector<4x256xf32>
    %c32_75 = arith.constant 32 : index
    %c0_76 = arith.constant 0 : index
    %74 = vector.load %arg3[%c32_75, %c0_76] : memref<36x256xf32, #tpu.memory_space<vmem>>, vector<4x256xf32>
    %75 = arith.mulf %73, %74 : vector<4x256xf32>
    %c32_77 = arith.constant 32 : index
    %c0_78 = arith.constant 0 : index
    %76 = vector.load %arg13[%c32_77, %c0_78] : memref<36x256xf32, #tpu.memory_space<vmem>>, vector<4x256xf32>
    tpu.vector_store %arg13[%c32_77, %c0_78], %75 {strides = array<i32>} : memref<36x256xf32, #tpu.memory_space<vmem>>, vector<4x256xf32>,
    %c0_79 = arith.constant 0 : index
    %c0_80 = arith.constant 0 : index
    %77 = vector.load %arg13[%c0_79, %c0_80] : memref<36x256xf32, #tpu.memory_space<vmem>>, vector<36x256xf32>
    %c0_81 = arith.constant 0 : index
    %c0_82 = arith.constant 0 : index
    %78 = vector.load %arg6[%c0_81, %c0_82] : memref<8x36xf32, #tpu.memory_space<vmem>>, vector<8x36xf32>
    %c0_83 = arith.constant 0 : index
    %c0_84 = arith.constant 0 : index
    %79 = vector.load %arg7[%c0_83, %c0_84] : memref<8x1xf32, #tpu.memory_space<vmem>>, vector<8x1xf32>
    %cst_85 = arith.constant dense<0.000000e+00> : vector<8x256xf32>
    %80 = tpu.matmul %78, %77, %cst_85 {dimension_numbers = #tpu.dot_dimension_numbers<[1], [0], [0], [1], [0, 0, 1, 1], [], []>} : vector<8x36xf32>, vector<36x256xf32>, vector<8x256xf32> -> vector<8x256xf32>
    %81 = vector.broadcast %79 : vector<8x1xf32> to vector<8x256xf32>
    %82 = arith.addf %80, %81 : vector<8x256xf32>
    %83 = math.tanh %82 : vector<8x256xf32>
    %84 = vector.extract_strided_slice %83 {offsets = [0, 0], sizes = [4, 256], strides = [1, 1]} : vector<8x256xf32> to vector<4x256xf32>
    %c0_86 = arith.constant 0 : index
    %c0_87 = arith.constant 0 : index
    %c0_88 = arith.constant 0 : index
    %85 = vector.load %arg10[%c0_86, %c0_87, %c0_88] : memref<1x4x256xf32, #tpu.memory_space<vmem>>, vector<1x4x256xf32>
    %86 = vector.shape_cast %85 : vector<1x4x256xf32> to vector<4x256xf32>
    %87 = vector.shape_cast %84 : vector<4x256xf32> to vector<1x4x256xf32>
    tpu.vector_store %arg10[%c0_86, %c0_87, %c0_88], %87 {strides = array<i32>} : memref<1x4x256xf32, #tpu.memory_space<vmem>>, vector<1x4x256xf32>,
    %88 = vector.extract_strided_slice %83 {offsets = [4, 0], sizes = [4, 256], strides = [1, 1]} : vector<8x256xf32> to vector<4x256xf32>
    %c17_i32_89 = arith.constant 17 : i32
    %89 = tpu.dynamic_rotate %43 by %c17_i32_89 dim 1 : vector<4x256xf32>, i32 -> vector<4x256xf32>
    %c0_90 = arith.constant 0 : index
    %c0_91 = arith.constant 0 : index
    %90 = vector.load %arg3[%c0_90, %c0_91] : memref<36x256xf32, #tpu.memory_space<vmem>>, vector<4x256xf32>
    %91 = arith.mulf %89, %90 : vector<4x256xf32>
    %c0_92 = arith.constant 0 : index
    %c0_93 = arith.constant 0 : index
    %92 = vector.load %arg13[%c0_92, %c0_93] : memref<36x256xf32, #tpu.memory_space<vmem>>, vector<4x256xf32>
    tpu.vector_store %arg13[%c0_92, %c0_93], %91 {strides = array<i32>} : memref<36x256xf32, #tpu.memory_space<vmem>>, vector<4x256xf32>,
    %c16_i32_94 = arith.constant 16 : i32
    %93 = tpu.dynamic_rotate %43 by %c16_i32_94 dim 1 : vector<4x256xf32>, i32 -> vector<4x256xf32>
    %c4_95 = arith.constant 4 : index
    %c0_96 = arith.constant 0 : index
    %94 = vector.load %arg3[%c4_95, %c0_96] : memref<36x256xf32, #tpu.memory_space<vmem>>, vector<4x256xf32>
    %95 = arith.mulf %93, %94 : vector<4x256xf32>
    %c4_97 = arith.constant 4 : index
    %c0_98 = arith.constant 0 : index
    %96 = vector.load %arg13[%c4_97, %c0_98] : memref<36x256xf32, #tpu.memory_space<vmem>>, vector<4x256xf32>
    tpu.vector_store %arg13[%c4_97, %c0_98], %95 {strides = array<i32>} : memref<36x256xf32, #tpu.memory_space<vmem>>, vector<4x256xf32>,
    %c15_i32_99 = arith.constant 15 : i32
    %97 = tpu.dynamic_rotate %43 by %c15_i32_99 dim 1 : vector<4x256xf32>, i32 -> vector<4x256xf32>
    %c8_100 = arith.constant 8 : index
    %c0_101 = arith.constant 0 : index
    %98 = vector.load %arg3[%c8_100, %c0_101] : memref<36x256xf32, #tpu.memory_space<vmem>>, vector<4x256xf32>
    %99 = arith.mulf %97, %98 : vector<4x256xf32>
    %c8_102 = arith.constant 8 : index
    %c0_103 = arith.constant 0 : index
    %100 = vector.load %arg13[%c8_102, %c0_103] : memref<36x256xf32, #tpu.memory_space<vmem>>, vector<4x256xf32>
    tpu.vector_store %arg13[%c8_102, %c0_103], %99 {strides = array<i32>} : memref<36x256xf32, #tpu.memory_space<vmem>>, vector<4x256xf32>,
    %c1_i32_104 = arith.constant 1 : i32
    %101 = tpu.dynamic_rotate %43 by %c1_i32_104 dim 1 : vector<4x256xf32>, i32 -> vector<4x256xf32>
    %c12_105 = arith.constant 12 : index
    %c0_106 = arith.constant 0 : index
    %102 = vector.load %arg3[%c12_105, %c0_106] : memref<36x256xf32, #tpu.memory_space<vmem>>, vector<4x256xf32>
    %103 = arith.mulf %101, %102 : vector<4x256xf32>
    %c12_107 = arith.constant 12 : index
    %c0_108 = arith.constant 0 : index
    %104 = vector.load %arg13[%c12_107, %c0_108] : memref<36x256xf32, #tpu.memory_space<vmem>>, vector<4x256xf32>
    tpu.vector_store %arg13[%c12_107, %c0_108], %103 {strides = array<i32>} : memref<36x256xf32, #tpu.memory_space<vmem>>, vector<4x256xf32>,
    %c16_109 = arith.constant 16 : index
    %c0_110 = arith.constant 0 : index
    %105 = vector.load %arg13[%c16_109, %c0_110] : memref<36x256xf32, #tpu.memory_space<vmem>>, vector<4x256xf32>
    tpu.vector_store %arg13[%c16_109, %c0_110], %43 {strides = array<i32>} : memref<36x256xf32, #tpu.memory_space<vmem>>, vector<4x256xf32>,
    %c255_i32_111 = arith.constant 255 : i32
    %106 = tpu.dynamic_rotate %43 by %c255_i32_111 dim 1 : vector<4x256xf32>, i32 -> vector<4x256xf32>
    %c20_112 = arith.constant 20 : index
    %c0_113 = arith.constant 0 : index
    %107 = vector.load %arg3[%c20_112, %c0_113] : memref<36x256xf32, #tpu.memory_space<vmem>>, vector<4x256xf32>
    %108 = arith.mulf %106, %107 : vector<4x256xf32>
    %c20_114 = arith.constant 20 : index
    %c0_115 = arith.constant 0 : index
    %109 = vector.load %arg13[%c20_114, %c0_115] : memref<36x256xf32, #tpu.memory_space<vmem>>, vector<4x256xf32>
    tpu.vector_store %arg13[%c20_114, %c0_115], %108 {strides = array<i32>} : memref<36x256xf32, #tpu.memory_space<vmem>>, vector<4x256xf32>,
    %c241_i32_116 = arith.constant 241 : i32
    %110 = tpu.dynamic_rotate %43 by %c241_i32_116 dim 1 : vector<4x256xf32>, i32 -> vector<4x256xf32>
    %c24_117 = arith.constant 24 : index
    %c0_118 = arith.constant 0 : index
    %111 = vector.load %arg3[%c24_117, %c0_118] : memref<36x256xf32, #tpu.memory_space<vmem>>, vector<4x256xf32>
    %112 = arith.mulf %110, %111 : vector<4x256xf32>
    %c24_119 = arith.constant 24 : index
    %c0_120 = arith.constant 0 : index
    %113 = vector.load %arg13[%c24_119, %c0_120] : memref<36x256xf32, #tpu.memory_space<vmem>>, vector<4x256xf32>
    tpu.vector_store %arg13[%c24_119, %c0_120], %112 {strides = array<i32>} : memref<36x256xf32, #tpu.memory_space<vmem>>, vector<4x256xf32>,
    %c240_i32_121 = arith.constant 240 : i32
    %114 = tpu.dynamic_rotate %43 by %c240_i32_121 dim 1 : vector<4x256xf32>, i32 -> vector<4x256xf32>
    %c28_122 = arith.constant 28 : index
    %c0_123 = arith.constant 0 : index
    %115 = vector.load %arg3[%c28_122, %c0_123] : memref<36x256xf32, #tpu.memory_space<vmem>>, vector<4x256xf32>
    %116 = arith.mulf %114, %115 : vector<4x256xf32>
    %c28_124 = arith.constant 28 : index
    %c0_125 = arith.constant 0 : index
    %117 = vector.load %arg13[%c28_124, %c0_125] : memref<36x256xf32, #tpu.memory_space<vmem>>, vector<4x256xf32>
    tpu.vector_store %arg13[%c28_124, %c0_125], %116 {strides = array<i32>} : memref<36x256xf32, #tpu.memory_space<vmem>>, vector<4x256xf32>,
    %c239_i32_126 = arith.constant 239 : i32
    %118 = tpu.dynamic_rotate %43 by %c239_i32_126 dim 1 : vector<4x256xf32>, i32 -> vector<4x256xf32>
    %c32_127 = arith.constant 32 : index
    %c0_128 = arith.constant 0 : index
    %119 = vector.load %arg3[%c32_127, %c0_128] : memref<36x256xf32, #tpu.memory_space<vmem>>, vector<4x256xf32>
    %120 = arith.mulf %118, %119 : vector<4x256xf32>
    %c32_129 = arith.constant 32 : index
    %c0_130 = arith.constant 0 : index
    %121 = vector.load %arg13[%c32_129, %c0_130] : memref<36x256xf32, #tpu.memory_space<vmem>>, vector<4x256xf32>
    tpu.vector_store %arg13[%c32_129, %c0_130], %120 {strides = array<i32>} : memref<36x256xf32, #tpu.memory_space<vmem>>, vector<4x256xf32>,
    %c0_131 = arith.constant 0 : index
    %c0_132 = arith.constant 0 : index
    %122 = vector.load %arg13[%c0_131, %c0_132] : memref<36x256xf32, #tpu.memory_space<vmem>>, vector<36x256xf32>
    %c0_133 = arith.constant 0 : index
    %c0_134 = arith.constant 0 : index
    %123 = vector.load %arg8[%c0_133, %c0_134] : memref<5x36xf32, #tpu.memory_space<vmem>>, vector<5x36xf32>
    %c0_135 = arith.constant 0 : index
    %c0_136 = arith.constant 0 : index
    %124 = vector.load %arg9[%c0_135, %c0_136] : memref<5x1xf32, #tpu.memory_space<vmem>>, vector<5x1xf32>
    %cst_137 = arith.constant dense<0.000000e+00> : vector<5x256xf32>
    %125 = tpu.matmul %123, %122, %cst_137 {dimension_numbers = #tpu.dot_dimension_numbers<[1], [0], [0], [1], [0, 0, 1, 1], [], []>} : vector<5x36xf32>, vector<36x256xf32>, vector<5x256xf32> -> vector<5x256xf32>
    %126 = vector.broadcast %124 : vector<5x1xf32> to vector<5x256xf32>
    %127 = arith.addf %125, %126 : vector<5x256xf32>
    %128 = tpu.iota {dimensions = array<i32: 0>} : vector<5x256xi32>
    %c0_i32 = arith.constant 0 : i32
    %129 = vector.broadcast %c0_i32 : i32 to vector<5x256xi32>
    %130 = arith.cmpi eq, %128, %129 : vector<5x256xi32>
    %131 = arith.negf %127 : vector<5x256xf32>
    %132 = math.exp %131 : vector<5x256xf32>
    %cst_138 = arith.constant 1.000000e+00 : f32
    %133 = vector.broadcast %cst_138 : f32 to vector<5x256xf32>
    %134 = arith.addf %133, %132 : vector<5x256xf32>
    %135 = arith.divf %133, %134 : vector<5x256xf32>
    %136 = math.tanh %127 : vector<5x256xf32>
    %137 = arith.select %130, %135, %136 : vector<5x256xi1>, vector<5x256xf32>
    %c0_139 = arith.constant 0 : index
    %c0_140 = arith.constant 0 : index
    %c0_141 = arith.constant 0 : index
    %138 = vector.load %arg11[%c0_139, %c0_140, %c0_141] : memref<1x5x256xf32, #tpu.memory_space<vmem>>, vector<1x5x256xf32>
    %139 = vector.shape_cast %138 : vector<1x5x256xf32> to vector<5x256xf32>
    %140 = vector.shape_cast %137 : vector<5x256xf32> to vector<1x5x256xf32>
    tpu.vector_store %arg11[%c0_139, %c0_140, %c0_141], %140 {strides = array<i32>} : memref<1x5x256xf32, #tpu.memory_space<vmem>>, vector<1x5x256xf32>,
    %c17_i32_142 = arith.constant 17 : i32
    %141 = tpu.dynamic_rotate %88 by %c17_i32_142 dim 1 : vector<4x256xf32>, i32 -> vector<4x256xf32>
    %c0_143 = arith.constant 0 : index
    %c0_144 = arith.constant 0 : index
    %142 = vector.load %arg3[%c0_143, %c0_144] : memref<36x256xf32, #tpu.memory_space<vmem>>, vector<4x256xf32>
    %143 = arith.mulf %141, %142 : vector<4x256xf32>
    %c0_145 = arith.constant 0 : index
    %c0_146 = arith.constant 0 : index
    %144 = vector.load %arg13[%c0_145, %c0_146] : memref<36x256xf32, #tpu.memory_space<vmem>>, vector<4x256xf32>
    tpu.vector_store %arg13[%c0_145, %c0_146], %143 {strides = array<i32>} : memref<36x256xf32, #tpu.memory_space<vmem>>, vector<4x256xf32>,
    %c16_i32_147 = arith.constant 16 : i32
    %145 = tpu.dynamic_rotate %88 by %c16_i32_147 dim 1 : vector<4x256xf32>, i32 -> vector<4x256xf32>
    %c4_148 = arith.constant 4 : index
    %c0_149 = arith.constant 0 : index
    %146 = vector.load %arg3[%c4_148, %c0_149] : memref<36x256xf32, #tpu.memory_space<vmem>>, vector<4x256xf32>
    %147 = arith.mulf %145, %146 : vector<4x256xf32>
    %c4_150 = arith.constant 4 : index
    %c0_151 = arith.constant 0 : index
    %148 = vector.load %arg13[%c4_150, %c0_151] : memref<36x256xf32, #tpu.memory_space<vmem>>, vector<4x256xf32>
    tpu.vector_store %arg13[%c4_150, %c0_151], %147 {strides = array<i32>} : memref<36x256xf32, #tpu.memory_space<vmem>>, vector<4x256xf32>,
    %c15_i32_152 = arith.constant 15 : i32
    %149 = tpu.dynamic_rotate %88 by %c15_i32_152 dim 1 : vector<4x256xf32>, i32 -> vector<4x256xf32>
    %c8_153 = arith.constant 8 : index
    %c0_154 = arith.constant 0 : index
    %150 = vector.load %arg3[%c8_153, %c0_154] : memref<36x256xf32, #tpu.memory_space<vmem>>, vector<4x256xf32>
    %151 = arith.mulf %149, %150 : vector<4x256xf32>
    %c8_155 = arith.constant 8 : index
    %c0_156 = arith.constant 0 : index
    %152 = vector.load %arg13[%c8_155, %c0_156] : memref<36x256xf32, #tpu.memory_space<vmem>>, vector<4x256xf32>
    tpu.vector_store %arg13[%c8_155, %c0_156], %151 {strides = array<i32>} : memref<36x256xf32, #tpu.memory_space<vmem>>, vector<4x256xf32>,
    %c1_i32_157 = arith.constant 1 : i32
    %153 = tpu.dynamic_rotate %88 by %c1_i32_157 dim 1 : vector<4x256xf32>, i32 -> vector<4x256xf32>
    %c12_158 = arith.constant 12 : index
    %c0_159 = arith.constant 0 : index
    %154 = vector.load %arg3[%c12_158, %c0_159] : memref<36x256xf32, #tpu.memory_space<vmem>>, vector<4x256xf32>
    %155 = arith.mulf %153, %154 : vector<4x256xf32>
    %c12_160 = arith.constant 12 : index
    %c0_161 = arith.constant 0 : index
    %156 = vector.load %arg13[%c12_160, %c0_161] : memref<36x256xf32, #tpu.memory_space<vmem>>, vector<4x256xf32>
    tpu.vector_store %arg13[%c12_160, %c0_161], %155 {strides = array<i32>} : memref<36x256xf32, #tpu.memory_space<vmem>>, vector<4x256xf32>,
    %c16_162 = arith.constant 16 : index
    %c0_163 = arith.constant 0 : index
    %157 = vector.load %arg13[%c16_162, %c0_163] : memref<36x256xf32, #tpu.memory_space<vmem>>, vector<4x256xf32>
    tpu.vector_store %arg13[%c16_162, %c0_163], %88 {strides = array<i32>} : memref<36x256xf32, #tpu.memory_space<vmem>>, vector<4x256xf32>,
    %c255_i32_164 = arith.constant 255 : i32
    %158 = tpu.dynamic_rotate %88 by %c255_i32_164 dim 1 : vector<4x256xf32>, i32 -> vector<4x256xf32>
    %c20_165 = arith.constant 20 : index
    %c0_166 = arith.constant 0 : index
    %159 = vector.load %arg3[%c20_165, %c0_166] : memref<36x256xf32, #tpu.memory_space<vmem>>, vector<4x256xf32>
    %160 = arith.mulf %158, %159 : vector<4x256xf32>
    %c20_167 = arith.constant 20 : index
    %c0_168 = arith.constant 0 : index
    %161 = vector.load %arg13[%c20_167, %c0_168] : memref<36x256xf32, #tpu.memory_space<vmem>>, vector<4x256xf32>
    tpu.vector_store %arg13[%c20_167, %c0_168], %160 {strides = array<i32>} : memref<36x256xf32, #tpu.memory_space<vmem>>, vector<4x256xf32>,
    %c241_i32_169 = arith.constant 241 : i32
    %162 = tpu.dynamic_rotate %88 by %c241_i32_169 dim 1 : vector<4x256xf32>, i32 -> vector<4x256xf32>
    %c24_170 = arith.constant 24 : index
    %c0_171 = arith.constant 0 : index
    %163 = vector.load %arg3[%c24_170, %c0_171] : memref<36x256xf32, #tpu.memory_space<vmem>>, vector<4x256xf32>
    %164 = arith.mulf %162, %163 : vector<4x256xf32>
    %c24_172 = arith.constant 24 : index
    %c0_173 = arith.constant 0 : index
    %165 = vector.load %arg13[%c24_172, %c0_173] : memref<36x256xf32, #tpu.memory_space<vmem>>, vector<4x256xf32>
    tpu.vector_store %arg13[%c24_172, %c0_173], %164 {strides = array<i32>} : memref<36x256xf32, #tpu.memory_space<vmem>>, vector<4x256xf32>,
    %c240_i32_174 = arith.constant 240 : i32
    %166 = tpu.dynamic_rotate %88 by %c240_i32_174 dim 1 : vector<4x256xf32>, i32 -> vector<4x256xf32>
    %c28_175 = arith.constant 28 : index
    %c0_176 = arith.constant 0 : index
    %167 = vector.load %arg3[%c28_175, %c0_176] : memref<36x256xf32, #tpu.memory_space<vmem>>, vector<4x256xf32>
    %168 = arith.mulf %166, %167 : vector<4x256xf32>
    %c28_177 = arith.constant 28 : index
    %c0_178 = arith.constant 0 : index
    %169 = vector.load %arg13[%c28_177, %c0_178] : memref<36x256xf32, #tpu.memory_space<vmem>>, vector<4x256xf32>
    tpu.vector_store %arg13[%c28_177, %c0_178], %168 {strides = array<i32>} : memref<36x256xf32, #tpu.memory_space<vmem>>, vector<4x256xf32>,
    %c239_i32_179 = arith.constant 239 : i32
    %170 = tpu.dynamic_rotate %88 by %c239_i32_179 dim 1 : vector<4x256xf32>, i32 -> vector<4x256xf32>
    %c32_180 = arith.constant 32 : index
    %c0_181 = arith.constant 0 : index
    %171 = vector.load %arg3[%c32_180, %c0_181] : memref<36x256xf32, #tpu.memory_space<vmem>>, vector<4x256xf32>
    %172 = arith.mulf %170, %171 : vector<4x256xf32>
    %c32_182 = arith.constant 32 : index
    %c0_183 = arith.constant 0 : index
    %173 = vector.load %arg13[%c32_182, %c0_183] : memref<36x256xf32, #tpu.memory_space<vmem>>, vector<4x256xf32>
    tpu.vector_store %arg13[%c32_182, %c0_183], %172 {strides = array<i32>} : memref<36x256xf32, #tpu.memory_space<vmem>>, vector<4x256xf32>,
    %c0_184 = arith.constant 0 : index
    %c0_185 = arith.constant 0 : index
    %174 = vector.load %arg13[%c0_184, %c0_185] : memref<36x256xf32, #tpu.memory_space<vmem>>, vector<36x256xf32>
    %cst_186 = arith.constant dense<0.000000e+00> : vector<4x256xf32>
    %175 = tpu.matmul %0, %174, %cst_186 {dimension_numbers = #tpu.dot_dimension_numbers<[1], [0], [0], [1], [0, 0, 1, 1], [], []>} : vector<4x36xf32>, vector<36x256xf32>, vector<4x256xf32> -> vector<4x256xf32>
    %176 = vector.broadcast %1 : vector<4x1xf32> to vector<4x256xf32>
    %177 = arith.addf %175, %176 : vector<4x256xf32>
    %178 = math.tanh %177 : vector<4x256xf32>
    %c0_187 = arith.constant 0 : index
    %c0_188 = arith.constant 0 : index
    %c0_189 = arith.constant 0 : index
    %179 = vector.load %arg12[%c0_187, %c0_188, %c0_189] : memref<1x4x256xf32, #tpu.memory_space<vmem>>, vector<1x4x256xf32>
    %180 = vector.shape_cast %179 : vector<1x4x256xf32> to vector<4x256xf32>
    %181 = vector.shape_cast %178 : vector<4x256xf32> to vector<1x4x256xf32>
    tpu.vector_store %arg12[%c0_187, %c0_188, %c0_189], %181 {strides = array<i32>} : memref<1x4x256xf32, #tpu.memory_space<vmem>>, vector<1x4x256xf32>,
    return
  }
  func.func @transform_0(%arg0: i32) -> (i32, i32, i32) {
    %c0_i32 = arith.constant 0 : i32
    %c0_i32_0 = arith.constant 0 : i32
    %c0_i32_1 = arith.constant 0 : i32
    return %arg0, %c0_i32, %c0_i32_0 : i32, i32, i32
  }
  func.func @transform_1(%arg0: i32) -> (i32, i32, i32) {
    %c0_i32 = arith.constant 0 : i32
    %c0_i32_0 = arith.constant 0 : i32
    %c0_i32_1 = arith.constant 0 : i32
    return %arg0, %c0_i32, %c0_i32_0 : i32, i32, i32
  }
  func.func @transform_2(%arg0: i32) -> (i32, i32) {
    %c0_i32 = arith.constant 0 : i32
    %c0_i32_0 = arith.constant 0 : i32
    %c0_i32_1 = arith.constant 0 : i32
    return %c0_i32, %c0_i32_0 : i32, i32
  }
  func.func @transform_3(%arg0: i32) -> (i32, i32) {
    %c0_i32 = arith.constant 0 : i32
    %c0_i32_0 = arith.constant 0 : i32
    %c0_i32_1 = arith.constant 0 : i32
    return %c0_i32, %c0_i32_0 : i32, i32
  }
  func.func @transform_4(%arg0: i32) -> (i32, i32) {
    %c0_i32 = arith.constant 0 : i32
    %c0_i32_0 = arith.constant 0 : i32
    %c0_i32_1 = arith.constant 0 : i32
    return %c0_i32, %c0_i32_0 : i32, i32
  }
  func.func @transform_5(%arg0: i32) -> (i32, i32) {
    %c0_i32 = arith.constant 0 : i32
    %c0_i32_0 = arith.constant 0 : i32
    %c0_i32_1 = arith.constant 0 : i32
    return %c0_i32, %c0_i32_0 : i32, i32
  }
  func.func @transform_6(%arg0: i32) -> (i32, i32) {
    %c0_i32 = arith.constant 0 : i32
    %c0_i32_0 = arith.constant 0 : i32
    %c0_i32_1 = arith.constant 0 : i32
    return %c0_i32, %c0_i32_0 : i32, i32
  }
  func.func @transform_7(%arg0: i32) -> (i32, i32) {
    %c0_i32 = arith.constant 0 : i32
    %c0_i32_0 = arith.constant 0 : i32
    %c0_i32_1 = arith.constant 0 : i32
    return %c0_i32, %c0_i32_0 : i32, i32
  }
  func.func @transform_8(%arg0: i32) -> (i32, i32) {
    %c0_i32 = arith.constant 0 : i32
    %c0_i32_0 = arith.constant 0 : i32
    %c0_i32_1 = arith.constant 0 : i32
    return %c0_i32, %c0_i32_0 : i32, i32
  }
  func.func @transform_9(%arg0: i32) -> (i32, i32, i32) {
    %c0_i32 = arith.constant 0 : i32
    %c0_i32_0 = arith.constant 0 : i32
    %c0_i32_1 = arith.constant 0 : i32
    return %arg0, %c0_i32, %c0_i32_0 : i32, i32, i32
  }
  func.func @transform_10(%arg0: i32) -> (i32, i32, i32) {
    %c0_i32 = arith.constant 0 : i32
    %c0_i32_0 = arith.constant 0 : i32
    %c0_i32_1 = arith.constant 0 : i32
    return %arg0, %c0_i32, %c0_i32_0 : i32, i32, i32
  }
  func.func @transform_11(%arg0: i32) -> (i32, i32, i32) {
    %c0_i32 = arith.constant 0 : i32
    %c0_i32_0 = arith.constant 0 : i32
    %c0_i32_1 = arith.constant 0 : i32
    return %arg0, %c0_i32, %c0_i32_0 : i32, i32, i32
  }
}

</mosaic_0001>

<llo_original>
// kernel: joint_model_forward.1
$region0: #{joint_model_forward.1}
  #allocation0 [shape = 'u32[]', space=smem, size = 0x4, offset = 0x4, fixed_abs, tag = 'smem constant byte address 0x4 - core index']
  #allocation1 [shape = 'u32[144,128]{1,0:T(1,128)}', space=vmem, size = 0x12000, scoped, tag = 'internal scratch']
  #allocation2 [shape = 'f32[36,256]{1,0:T(8,128)}', space=vmem, size = 0xa000, scoped, tag = 'scratch operand']
  %s0 = inlined_call_operand.vmem [shape: f32[2,4,256], index: 0, kind: input, shape index: {}]
  %s1 = inlined_call_operand.vmem [shape: f32[2,4,256], index: 1, kind: input, shape index: {}]
  %s2 = inlined_call_operand.vmem [shape: f32[36,256], index: 2, kind: input, shape index: {}]
  %s3 = inlined_call_operand.vmem [shape: f32[4,36], index: 3, kind: input, shape index: {}]
  %s4 = inlined_call_operand.vmem [shape: f32[4,1], index: 4, kind: input, shape index: {}]
  %s5 = inlined_call_operand.vmem [shape: f32[8,36], index: 5, kind: input, shape index: {}]
  %s6 = inlined_call_operand.vmem [shape: f32[8,1], index: 6, kind: input, shape index: {}]
  %s7 = inlined_call_operand.vmem [shape: f32[5,36], index: 7, kind: input, shape index: {}]
  %s8 = inlined_call_operand.vmem [shape: f32[5,1], index: 8, kind: input, shape index: {}]
  %s9 = inlined_call_operand.vmem [shape: f32[2,4,256], index: 9, kind: output, shape index: {0}]
  %s10 = inlined_call_operand.vmem [shape: f32[2,5,256], index: 10, kind: output, shape index: {1}]
  %s11 = inlined_call_operand.vmem [shape: f32[2,4,256], index: 11, kind: output, shape index: {2}]
  %12 = xla_tuple %s9, %s10, %s11
  %s13 = sld [smem:[#allocation0]]
  $region85: #{joint_model_forward.1} parent=0
    _
  %s15 = ssub.s32 1, %s13
  %s16 = scalar_select 0, %s15, %s13
  loop: start=0, step=1, limit=4
  $region2: #{joint_model_forward.1} parent=0 // loop_pre_header
    _
  $region3: #{joint_model_forward.1} parent=0 // loop_header
    %s18 = sphi 0, %s22
    %p19 = scmp.ge.s32.totalorder %s18, 4
    %s28 = sphi 0, %s30
    %s31 = sphi 0, %s28
    %s32 = sphi 0, %s31
    %s48 = sphi 0, %s32
    %s54 = sphi 0, %s56
    %s57 = sphi 0, %s54
    %s58 = sphi 0, %s57
    %s74 = sphi 0, %s58
    %s78 = sphi 0, %s78
    %s80 = sphi 0, %s78
    %s81 = sphi 0, %s80
    %s95 = sphi 0, %s81
    %s99 = sphi 0, %s99
    %s101 = sphi 0, %s99
    %s102 = sphi 0, %s101
    %s116 = sphi 0, %s102
    %s120 = sphi 0, %s120
    %s122 = sphi 0, %s120
    %s123 = sphi 0, %s122
    %s137 = sphi 0, %s123
    %s141 = sphi 0, %s141
    %s143 = sphi 0, %s141
    %s144 = sphi 0, %s143
    %s158 = sphi 0, %s144
    %s162 = sphi 0, %s162
    %s164 = sphi 0, %s162
    %s165 = sphi 0, %s164
    %s179 = sphi 0, %s165
    %s183 = sphi 0, %s183
    %s185 = sphi 0, %s183
    %s186 = sphi 0, %s185
    %s200 = sphi 0, %s186
    %s204 = sphi 0, %s204
    %s206 = sphi 0, %s204
    %s207 = sphi 0, %s206
    %s221 = sphi 0, %s207
    %s227 = sphi 0, %s229
    %s230 = sphi 0, %s227
    %s231 = sphi 0, %s230
    %s247 = sphi 0, %s231
    %s253 = sphi 0, %s255
    %s256 = sphi 0, %s253
    %s257 = sphi 0, %s256
    %s273 = sphi 0, %s257
    %s279 = sphi 0, %s281
    %s282 = sphi 0, %s279
    %s283 = sphi 0, %s282
    %s299 = sphi 0, %s283
  $region4: #{joint_model_forward.1} parent=0 // loop_header_branch
    %21 = sbr.rel (%p19) target = $region8
  $region5: #{joint_model_forward.1} parent=0 // loop_body
    %s23 = ssub.s32 %s18, 1
    %s24 = ssub.s32 %s18, 2
    %s25 = sadd.s32 %s18, 1
    %s26 = ssub.s32 %s18, %s25
    %p27 = scmp.eq.s32.totalorder %s26, 0
    %s29 = sadd.s32 %s28, 1
    %s30 = scalar_select %p27, %s28, %s29
    %p33 = pneg %p27
    %p34 = scmp.eq.s32.totalorder %s18, 1
    %p35 = por %p33, %p34
    %p36 = scmp.ne.s32.totalorder %s28, %s31
    %p37 = scmp.eq.s32.totalorder %s18, 0
    %p38 = por %p36, %p37
    %p39 = scmp.ne.s32.totalorder %s28, %s31
    %p40 = scmp.eq.s32.totalorder %s23, 1
    %p41 = por %p39, %p40
    %p42 = scmp.ne.s32.totalorder %s31, %s32
    %p43 = scmp.eq.s32.totalorder %s23, 0
    %p44 = por %p42, %p43
    %p45 = scmp.ne.s32.totalorder %s31, %s32
    %p46 = scmp.eq.s32.totalorder %s24, 1
    %p47 = por %p45, %p46
    %p49 = scmp.ne.s32.totalorder %s32, %s48
    %p50 = scmp.eq.s32.totalorder %s24, 0
    %p51 = por %p49, %p50
    %s52 = ssub.s32 %s18, %s25
    %p53 = scmp.eq.s32.totalorder %s52, 0
    %s55 = sadd.s32 %s54, 1
    %s56 = scalar_select %p53, %s54, %s55
    %p59 = pneg %p53
    %p60 = scmp.eq.s32.totalorder %s18, 1
    %p61 = por %p59, %p60
    %p62 = scmp.ne.s32.totalorder %s54, %s57
    %p63 = scmp.eq.s32.totalorder %s18, 0
    %p64 = por %p62, %p63
    %p65 = scmp.ne.s32.totalorder %s54, %s57
    %p66 = scmp.eq.s32.totalorder %s23, 1
    %p67 = por %p65, %p66
    %p68 = scmp.ne.s32.totalorder %s57, %s58
    %p69 = scmp.eq.s32.totalorder %s23, 0
    %p70 = por %p68, %p69
    %p71 = scmp.ne.s32.totalorder %s57, %s58
    %p72 = scmp.eq.s32.totalorder %s24, 1
    %p73 = por %p71, %p72
    %p75 = scmp.ne.s32.totalorder %s58, %s74
    %p76 = scmp.eq.s32.totalorder %s24, 0
    %p77 = por %p75, %p76
    %s79 = sadd.s32 %s78, 1
    %p82 = scmp.eq.s32.totalorder %s18, 1
    %p83 = scmp.ne.s32.totalorder %s78, %s80
    %p84 = scmp.eq.s32.totalorder %s18, 0
    %p85 = por %p83, %p84
    %p86 = scmp.ne.s32.totalorder %s78, %s80
    %p87 = scmp.eq.s32.totalorder %s23, 1
    %p88 = por %p86, %p87
    %p89 = scmp.ne.s32.totalorder %s80, %s81
    %p90 = scmp.eq.s32.totalorder %s23, 0
    %p91 = por %p89, %p90
    %p92 = scmp.ne.s32.totalorder %s80, %s81
    %p93 = scmp.eq.s32.totalorder %s24, 1
    %p94 = por %p92, %p93
    %p96 = scmp.ne.s32.totalorder %s81, %s95
    %p97 = scmp.eq.s32.totalorder %s24, 0
    %p98 = por %p96, %p97
    %s100 = sadd.s32 %s99, 1
    %p103 = scmp.eq.s32.totalorder %s18, 1
    %p104 = scmp.ne.s32.totalorder %s99, %s101
    %p105 = scmp.eq.s32.totalorder %s18, 0
    %p106 = por %p104, %p105
    %p107 = scmp.ne.s32.totalorder %s99, %s101
    %p108 = scmp.eq.s32.totalorder %s23, 1
    %p109 = por %p107, %p108
    %p110 = scmp.ne.s32.totalorder %s101, %s102
    %p111 = scmp.eq.s32.totalorder %s23, 0
    %p112 = por %p110, %p111
    %p113 = scmp.ne.s32.totalorder %s101, %s102
    %p114 = scmp.eq.s32.totalorder %s24, 1
    %p115 = por %p113, %p114
    %p117 = scmp.ne.s32.totalorder %s102, %s116
    %p118 = scmp.eq.s32.totalorder %s24, 0
    %p119 = por %p117, %p118
    %s121 = sadd.s32 %s120, 1
    %p124 = scmp.eq.s32.totalorder %s18, 1
    %p125 = scmp.ne.s32.totalorder %s120, %s122
    %p126 = scmp.eq.s32.totalorder %s18, 0
    %p127 = por %p125, %p126
    %p128 = scmp.ne.s32.totalorder %s120, %s122
    %p129 = scmp.eq.s32.totalorder %s23, 1
    %p130 = por %p128, %p129
    %p131 = scmp.ne.s32.totalorder %s122, %s123
    %p132 = scmp.eq.s32.totalorder %s23, 0
    %p133 = por %p131, %p132
    %p134 = scmp.ne.s32.totalorder %s122, %s123
    %p135 = scmp.eq.s32.totalorder %s24, 1
    %p136 = por %p134, %p135
    %p138 = scmp.ne.s32.totalorder %s123, %s137
    %p139 = scmp.eq.s32.totalorder %s24, 0
    %p140 = por %p138, %p139
    %s142 = sadd.s32 %s141, 1
    %p145 = scmp.eq.s32.totalorder %s18, 1
    %p146 = scmp.ne.s32.totalorder %s141, %s143
    %p147 = scmp.eq.s32.totalorder %s18, 0
    %p148 = por %p146, %p147
    %p149 = scmp.ne.s32.totalorder %s141, %s143
    %p150 = scmp.eq.s32.totalorder %s23, 1
    %p151 = por %p149, %p150
    %p152 = scmp.ne.s32.totalorder %s143, %s144
    %p153 = scmp.eq.s32.totalorder %s23, 0
    %p154 = por %p152, %p153
    %p155 = scmp.ne.s32.totalorder %s143, %s144
    %p156 = scmp.eq.s32.totalorder %s24, 1
    %p157 = por %p155, %p156
    %p159 = scmp.ne.s32.totalorder %s144, %s158
    %p160 = scmp.eq.s32.totalorder %s24, 0
    %p161 = por %p159, %p160
    %s163 = sadd.s32 %s162, 1
    %p166 = scmp.eq.s32.totalorder %s18, 1
    %p167 = scmp.ne.s32.totalorder %s162, %s164
    %p168 = scmp.eq.s32.totalorder %s18, 0
    %p169 = por %p167, %p168
    %p170 = scmp.ne.s32.totalorder %s162, %s164
    %p171 = scmp.eq.s32.totalorder %s23, 1
    %p172 = por %p170, %p171
    %p173 = scmp.ne.s32.totalorder %s164, %s165
    %p174 = scmp.eq.s32.totalorder %s23, 0
    %p175 = por %p173, %p174
    %p176 = scmp.ne.s32.totalorder %s164, %s165
    %p177 = scmp.eq.s32.totalorder %s24, 1
    %p178 = por %p176, %p177
    %p180 = scmp.ne.s32.totalorder %s165, %s179
    %p181 = scmp.eq.s32.totalorder %s24, 0
    %p182 = por %p180, %p181
    %s184 = sadd.s32 %s183, 1
    %p187 = scmp.eq.s32.totalorder %s18, 1
    %p188 = scmp.ne.s32.totalorder %s183, %s185
    %p189 = scmp.eq.s32.totalorder %s18, 0
    %p190 = por %p188, %p189
    %p191 = scmp.ne.s32.totalorder %s183, %s185
    %p192 = scmp.eq.s32.totalorder %s23, 1
    %p193 = por %p191, %p192
    %p194 = scmp.ne.s32.totalorder %s185, %s186
    %p195 = scmp.eq.s32.totalorder %s23, 0
    %p196 = por %p194, %p195
    %p197 = scmp.ne.s32.totalorder %s185, %s186
    %p198 = scmp.eq.s32.totalorder %s24, 1
    %p199 = por %p197, %p198
    %p201 = scmp.ne.s32.totalorder %s186, %s200
    %p202 = scmp.eq.s32.totalorder %s24, 0
    %p203 = por %p201, %p202
    %s205 = sadd.s32 %s204, 1
    %p208 = scmp.eq.s32.totalorder %s18, 1
    %p209 = scmp.ne.s32.totalorder %s204, %s206
    %p210 = scmp.eq.s32.totalorder %s18, 0
    %p211 = por %p209, %p210
    %p212 = scmp.ne.s32.totalorder %s204, %s206
    %p213 = scmp.eq.s32.totalorder %s23, 1
    %p214 = por %p212, %p213
    %p215 = scmp.ne.s32.totalorder %s206, %s207
    %p216 = scmp.eq.s32.totalorder %s23, 0
    %p217 = por %p215, %p216
    %p218 = scmp.ne.s32.totalorder %s206, %s207
    %p219 = scmp.eq.s32.totalorder %s24, 1
    %p220 = por %p218, %p219
    %p222 = scmp.ne.s32.totalorder %s207, %s221
    %p223 = scmp.eq.s32.totalorder %s24, 0
    %p224 = por %p222, %p223
    %s225 = ssub.s32 %s18, %s25
    %p226 = scmp.eq.s32.totalorder %s225, 0
    %s228 = sadd.s32 %s227, 1
    %s229 = scalar_select %p226, %s227, %s228
    %p232 = pneg %p226
    %p233 = scmp.eq.s32.totalorder %s18, 1
    %p234 = por %p232, %p233
    %p235 = scmp.ne.s32.totalorder %s227, %s230
    %p236 = scmp.eq.s32.totalorder %s18, 0
    %p237 = por %p235, %p236
    %p238 = scmp.ne.s32.totalorder %s227, %s230
    %p239 = scmp.eq.s32.totalorder %s23, 1
    %p240 = por %p238, %p239
    %p241 = scmp.ne.s32.totalorder %s230, %s231
    %p242 = scmp.eq.s32.totalorder %s23, 0
    %p243 = por %p241, %p242
    %p244 = scmp.ne.s32.totalorder %s230, %s231
    %p245 = scmp.eq.s32.totalorder %s24, 1
    %p246 = por %p244, %p245
    %p248 = scmp.ne.s32.totalorder %s231, %s247
    %p249 = scmp.eq.s32.totalorder %s24, 0
    %p250 = por %p248, %p249
    %s251 = ssub.s32 %s18, %s25
    %p252 = scmp.eq.s32.totalorder %s251, 0
    %s254 = sadd.s32 %s253, 1
    %s255 = scalar_select %p252, %s253, %s254
    %p258 = pneg %p252
    %p259 = scmp.eq.s32.totalorder %s18, 1
    %p260 = por %p258, %p259
    %p261 = scmp.ne.s32.totalorder %s253, %s256
    %p262 = scmp.eq.s32.totalorder %s18, 0
    %p263 = por %p261, %p262
    %p264 = scmp.ne.s32.totalorder %s253, %s256
    %p265 = scmp.eq.s32.totalorder %s23, 1
    %p266 = por %p264, %p265
    %p267 = scmp.ne.s32.totalorder %s256, %s257
    %p268 = scmp.eq.s32.totalorder %s23, 0
    %p269 = por %p267, %p268
    %p270 = scmp.ne.s32.totalorder %s256, %s257
    %p271 = scmp.eq.s32.totalorder %s24, 1
    %p272 = por %p270, %p271
    %p274 = scmp.ne.s32.totalorder %s257, %s273
    %p275 = scmp.eq.s32.totalorder %s24, 0
    %p276 = por %p274, %p275
    %s277 = ssub.s32 %s18, %s25
    %p278 = scmp.eq.s32.totalorder %s277, 0
    %s280 = sadd.s32 %s279, 1
    %s281 = scalar_select %p278, %s279, %s280
    %p284 = pneg %p278
    %p285 = scmp.eq.s32.totalorder %s18, 1
    %p286 = por %p284, %p285
    %p287 = scmp.ne.s32.totalorder %s279, %s282
    %p288 = scmp.eq.s32.totalorder %s18, 0
    %p289 = por %p287, %p288
    %p290 = scmp.ne.s32.totalorder %s279, %s282
    %p291 = scmp.eq.s32.totalorder %s23, 1
    %p292 = por %p290, %p291
    %p293 = scmp.ne.s32.totalorder %s282, %s283
    %p294 = scmp.eq.s32.totalorder %s23, 0
    %p295 = por %p293, %p294
    %p296 = scmp.ne.s32.totalorder %s282, %s283
    %p297 = scmp.eq.s32.totalorder %s24, 1
    %p298 = por %p296, %p297
    %p300 = scmp.ne.s32.totalorder %s283, %s299
    %p301 = scmp.eq.s32.totalorder %s24, 0
    %p302 = por %p300, %p301
    %p303 = scmp.le.s32.totalorder 1, %s18
    %p304 = scmp.lt.s32.totalorder %s18, 3
    %p305 = pnand %p303, %p304
    %p306 = pneg %p305
    // Predicated region
    $region9: #{joint_model_forward.1} parent=5 // pred_check
      _
    $region10: #{joint_model_forward.1} parent=5 // pred_check_branch
      %308 = sbr.rel (%p305) target = $region12
    $region11: #{joint_model_forward.1} parent=5 // pred_region
      %s309 = ssub.s32 %s18, 1
      // Predicated region
      $region13: #{joint_model_forward.1} parent=11 // pred_check
        %p310 = pneg %p91
      $region14: #{joint_model_forward.1} parent=11 // pred_check_branch
        %312 = sbr.rel (%p310) target = $region16
      $region15: #{joint_model_forward.1} parent=11 // pred_region
        _
      $region16: #{joint_model_forward.1} parent=11 // pred_fallthru
        _
      // Predicated region
      $region17: #{joint_model_forward.1} parent=11 // pred_check
        %p313 = pneg %p112
      $region18: #{joint_model_forward.1} parent=11 // pred_check_branch
        %315 = sbr.rel (%p313) target = $region20
      $region19: #{joint_model_forward.1} parent=11 // pred_region
        _
      $region20: #{joint_model_forward.1} parent=11 // pred_fallthru
        _
      // Predicated region
      $region21: #{joint_model_forward.1} parent=11 // pred_check
        %p316 = pneg %p133
      $region22: #{joint_model_forward.1} parent=11 // pred_check_branch
        %318 = sbr.rel (%p316) target = $region24
      $region23: #{joint_model_forward.1} parent=11 // pred_region
        _
      $region24: #{joint_model_forward.1} parent=11 // pred_fallthru
        _
      // Predicated region
      $region25: #{joint_model_forward.1} parent=11 // pred_check
        %p319 = pneg %p154
      $region26: #{joint_model_forward.1} parent=11 // pred_check_branch
        %321 = sbr.rel (%p319) target = $region28
      $region27: #{joint_model_forward.1} parent=11 // pred_region
        _
      $region28: #{joint_model_forward.1} parent=11 // pred_fallthru
        _
      // Predicated region
      $region29: #{joint_model_forward.1} parent=11 // pred_check
        %p322 = pneg %p175
      $region30: #{joint_model_forward.1} parent=11 // pred_check_branch
        %324 = sbr.rel (%p322) target = $region32
      $region31: #{joint_model_forward.1} parent=11 // pred_region
        _
      $region32: #{joint_model_forward.1} parent=11 // pred_fallthru
        _
      // Predicated region
      $region33: #{joint_model_forward.1} parent=11 // pred_check
        %p325 = pneg %p196
      $region34: #{joint_model_forward.1} parent=11 // pred_check_branch
        %327 = sbr.rel (%p325) target = $region36
      $region35: #{joint_model_forward.1} parent=11 // pred_region
        _
      $region36: #{joint_model_forward.1} parent=11 // pred_fallthru
        _
      // Predicated region
      $region37: #{joint_model_forward.1} parent=11 // pred_check
        %p328 = pneg %p217
      $region38: #{joint_model_forward.1} parent=11 // pred_check_branch
        %330 = sbr.rel (%p328) target = $region40
      $region39: #{joint_model_forward.1} parent=11 // pred_region
        _
      $region40: #{joint_model_forward.1} parent=11 // pred_fallthru
        _
    $region12: #{joint_model_forward.1} parent=5 // pred_fallthru
      _
    %p331 = scmp.lt.s32.totalorder %s18, 2
    // Predicated region
    $region41: #{joint_model_forward.1} parent=5 // pred_check
      %p332 = pneg %p331
    $region42: #{joint_model_forward.1} parent=5 // pred_check_branch
      %334 = sbr.rel (%p332) target = $region44
    $region43: #{joint_model_forward.1} parent=5 // pred_region
      // Predicated region
      $region45: #{joint_model_forward.1} parent=43 // pred_check
        %p335 = pneg %p38
      $region46: #{joint_model_forward.1} parent=43 // pred_check_branch
        %337 = sbr.rel (%p335) target = $region48
      $region47: #{joint_model_forward.1} parent=43 // pred_region
        %p338 = scmp.lt.s32.totalorder %s18, 1
        %s339 = scalar_select %p338, %s18, 1
        %s340 = smul.addr %s339, 2
        %s341 = smul.addr %s340, 4
        %s342 = scalar_lea.vmem %s0, %s341
      $region48: #{joint_model_forward.1} parent=43 // pred_fallthru
        _
      // Predicated region
      $region49: #{joint_model_forward.1} parent=43 // pred_check
        %p343 = pneg %p64
      $region50: #{joint_model_forward.1} parent=43 // pred_check_branch
        %345 = sbr.rel (%p343) target = $region52
      $region51: #{joint_model_forward.1} parent=43 // pred_region
        %p346 = scmp.lt.s32.totalorder %s18, 1
        %s347 = scalar_select %p346, %s18, 1
        %s348 = smul.addr %s347, 2
        %s349 = smul.addr %s348, 4
        %s350 = scalar_lea.vmem %s1, %s349
      $region52: #{joint_model_forward.1} parent=43 // pred_fallthru
        _
    $region44: #{joint_model_forward.1} parent=5 // pred_fallthru
      _
    %p351 = scmp.le.s32.totalorder 1, %s18
    %p352 = scmp.lt.s32.totalorder %s18, 3
    %p353 = pnand %p351, %p352
    %p354 = pneg %p353
    // Predicated region
    $region53: #{joint_model_forward.1} parent=5 // pred_check
      _
    $region54: #{joint_model_forward.1} parent=5 // pred_check_branch
      %356 = sbr.rel (%p353) target = $region56
    $region55: #{joint_model_forward.1} parent=5 // pred_region
      %s357 = ssub.s32 %s18, 1
      %p358 = scmp.lt.s32.totalorder %s23, 1
      %s359 = scalar_select %p358, %s23, 1
      %s360 = smul.addr %s359, 2
      %s361 = smul.addr %s360, 4
      %s362 = scalar_lea.vmem %s0, %s361
      %p363 = pneg %p44
      %p364 = pneg %p41
      %p365 = scmp.lt.s32.totalorder %s23, 1
      %s366 = scalar_select %p365, %s23, 1
      %s367 = smul.addr %s366, 2
      %s368 = smul.addr %s367, 4
      %s369 = scalar_lea.vmem %s1, %s368
      %p370 = pneg %p70
      %p371 = pneg %p67
      %p372 = pneg %p91
      %p373 = pneg %p88
      %p374 = pneg %p112
      %p375 = pneg %p109
      %p376 = pneg %p133
      %p377 = pneg %p130
      %p378 = pneg %p154
      %p379 = pneg %p151
      %p380 = pneg %p175
      %p381 = pneg %p172
      %p382 = pneg %p196
      %p383 = pneg %p193
      %p384 = pneg %p217
      %p385 = pneg %p214
      %p386 = pneg %p243
      %p387 = pneg %p240
      %p388 = scmp.lt.s32.totalorder %s23, 1
      %s389 = scalar_select %p388, %s23, 1
      %s390 = smul.addr %s389, 2
      %s391 = smul.addr %s390, 4
      %s392 = scalar_lea.vmem %s9, %s391
      %p393 = pneg %p269
      %p394 = pneg %p266
      %p395 = scmp.lt.s32.totalorder %s23, 1
      %s396 = scalar_select %p395, %s23, 1
      %s397 = smul.addr %s396, 2
      %s398 = smul.addr %s397, 8
      %s399 = scalar_lea.vmem %s10, %s398
      %p400 = pneg %p295
      %p401 = pneg %p292
      %p402 = scmp.lt.s32.totalorder %s23, 1
      %s403 = scalar_select %p402, %s23, 1
      %s404 = smul.addr %s403, 2
      %s405 = smul.addr %s404, 4
      %s406 = scalar_lea.vmem %s11, %s405
      %p407 = scmp.lt.s32.totalorder %s23, 1
      %s408 = scalar_select %p407, %s23, 1
      %s409 = smul.addr %s408, 2
      %s410 = smul.addr %s409, 4
      %s411 = scalar_lea.vmem %s0, %s410
      %p412 = scmp.lt.s32.totalorder %s23, 1
      %s413 = scalar_select %p412, %s23, 1
      %s414 = smul.addr %s413, 2
      %s415 = smul.addr %s414, 4
      %s416 = scalar_lea.vmem %s1, %s415
      %p417 = scmp.lt.s32.totalorder %s23, 1
      %s418 = scalar_select %p417, %s23, 1
      %s419 = smul.addr %s418, 2
      %s420 = smul.addr %s419, 4
      %s421 = scalar_lea.vmem %s9, %s420
      %p422 = scmp.lt.s32.totalorder %s23, 1
      %s423 = scalar_select %p422, %s23, 1
      %s424 = smul.addr %s423, 2
      %s425 = smul.addr %s424, 8
      %s426 = scalar_lea.vmem %s10, %s425
      %p427 = scmp.lt.s32.totalorder %s23, 1
      %s428 = scalar_select %p427, %s23, 1
      %s429 = smul.addr %s428, 2
      %s430 = smul.addr %s429, 4
      %s431 = scalar_lea.vmem %s11, %s430
      %v432 = vld [vmem:[%s3] sm:$0xf]
      %v433 = vld [vmem:[%s4] sm:$0xf]
      %v434 = vld [vmem:[%s411] sm:$0xff]
      %v435 = vld [vmem:[%s416] sm:$0xff]
      %v437 = vcombine.high %v434, %v434
      %439 = vrot.lane.b32.xlu0 %v434, 17
      %v440 = vpop.permute.xlu0 %439
      %441 = vrot.lane.b32.xlu0 %v437, 17
      %v442 = vpop.permute.xlu0 %441
      %v443 = vlaneseq
      %v444 = vand.u32 %v443, 127
      %vm445 = vcmp.lt.s32.totalorder %v444, 17
      %v446 = vsel %vm445, %v440, %v442
      %v447 = vsel %vm445, %v442, %v440
      %v448 = vld [vmem:[%s2] sm:$0xf]
      %v449 = vld [vmem:[%s2 + $0x8] sm:$0xf]
      %v450 = vmul.f32 %v447, %v448
      %v451 = vmul.f32 %v446, %v449
      %452 = vst [vmem:[#allocation2] sm:$0xf] %v450
      %453 = vst [vmem:[#allocation2 + $0x8] sm:$0xf] %v451
      %454 = vrot.lane.b32.xlu0 %v434, 16
      %v455 = vpop.permute.xlu0 %454
      %456 = vrot.lane.b32.xlu0 %v437, 16
      %v457 = vpop.permute.xlu0 %456
      %vm458 = vcmp.lt.s32.totalorder %v444, 16
      %v459 = vsel %vm458, %v455, %v457
      %v460 = vsel %vm458, %v457, %v455
      %v461 = vld [vmem:[%s2] sm:$0xf0]
      %v462 = vld [vmem:[%s2 + $0x8] sm:$0xf0]
      %v465 = vrot.slane %v461, 4
      %v466 = vrot.slane %v462, 4
      %v469 = vmul.f32 %v460, %v465
      %v470 = vmul.f32 %v459, %v466
      %v473 = vrot.slane %v469, 4
      %v474 = vrot.slane %v470, 4
      %477 = vst [vmem:[#allocation2] sm:$0xf0] %v473
      %478 = vst [vmem:[#allocation2 + $0x8] sm:$0xf0] %v474
      %479 = vrot.lane.b32.xlu0 %v434, 15
      %v480 = vpop.permute.xlu0 %479
      %481 = vrot.lane.b32.xlu0 %v437, 15
      %v482 = vpop.permute.xlu0 %481
      %vm483 = vcmp.lt.s32.totalorder %v444, 15
      %v484 = vsel %vm483, %v480, %v482
      %v485 = vsel %vm483, %v482, %v480
      %v486 = vld [vmem:[%s2 + $0x10] sm:$0xf]
      %v487 = vld [vmem:[%s2 + $0x18] sm:$0xf]
      %v488 = vmul.f32 %v485, %v486
      %v489 = vmul.f32 %v484, %v487
      %490 = vst [vmem:[#allocation2 + $0x10] sm:$0xf] %v488
      %491 = vst [vmem:[#allocation2 + $0x18] sm:$0xf] %v489
      %492 = vrot.lane.b32.xlu0 %v434, 1
      %v493 = vpop.permute.xlu0 %492
      %494 = vrot.lane.b32.xlu0 %v437, 1
      %v495 = vpop.permute.xlu0 %494
      %vm496 = vcmp.lt.s32.totalorder %v444, 1
      %v497 = vsel %vm496, %v493, %v495
      %v498 = vsel %vm496, %v495, %v493
      %v499 = vld [vmem:[%s2 + $0x10] sm:$0xf0]
      %v500 = vld [vmem:[%s2 + $0x18] sm:$0xf0]
      %v503 = vrot.slane %v499, 4
      %v504 = vrot.slane %v500, 4
      %v507 = vmul.f32 %v498, %v503
      %v508 = vmul.f32 %v497, %v504
      %v511 = vrot.slane %v507, 4
      %v512 = vrot.slane %v508, 4
      %515 = vst [vmem:[#allocation2 + $0x10] sm:$0xf0] %v511
      %516 = vst [vmem:[#allocation2 + $0x18] sm:$0xf0] %v512
      %517 = vst [vmem:[#allocation2 + $0x20] sm:$0xf] %v434
      %518 = vst [vmem:[#allocation2 + $0x28] sm:$0xf] %v437
      %519 = vrot.lane.b32.xlu0 %v434, 127
      %v520 = vpop.permute.xlu0 %519
      %521 = vrot.lane.b32.xlu0 %v437, 127
      %v522 = vpop.permute.xlu0 %521
      %vm523 = vcmp.lt.s32.totalorder %v444, 127
      %v524 = vsel %vm523, %v520, %v522
      %v525 = vsel %vm523, %v522, %v520
      %v526 = vld [vmem:[%s2 + $0x20] sm:$0xf0]
      %v527 = vld [vmem:[%s2 + $0x28] sm:$0xf0]
      %v530 = vrot.slane %v526, 4
      %v531 = vrot.slane %v527, 4
      %v534 = vmul.f32 %v524, %v530
      %v535 = vmul.f32 %v525, %v531
      %v538 = vrot.slane %v534, 4
      %v539 = vrot.slane %v535, 4
      %542 = vst [vmem:[#allocation2 + $0x20] sm:$0xf0] %v538
      %543 = vst [vmem:[#allocation2 + $0x28] sm:$0xf0] %v539
      %544 = vrot.lane.b32.xlu0 %v434, 113
      %v545 = vpop.permute.xlu0 %544
      %546 = vrot.lane.b32.xlu0 %v437, 113
      %v547 = vpop.permute.xlu0 %546
      %vm548 = vcmp.lt.s32.totalorder %v444, 113
      %v549 = vsel %vm548, %v545, %v547
      %v550 = vsel %vm548, %v547, %v545
      %v551 = vld [vmem:[%s2 + $0x30] sm:$0xf]
      %v552 = vld [vmem:[%s2 + $0x38] sm:$0xf]
      %v553 = vmul.f32 %v549, %v551
      %v554 = vmul.f32 %v550, %v552
      %555 = vst [vmem:[#allocation2 + $0x30] sm:$0xf] %v553
      %556 = vst [vmem:[#allocation2 + $0x38] sm:$0xf] %v554
      %557 = vrot.lane.b32.xlu0 %v434, 112
      %v558 = vpop.permute.xlu0 %557
      %559 = vrot.lane.b32.xlu0 %v437, 112
      %v560 = vpop.permute.xlu0 %559
      %vm561 = vcmp.lt.s32.totalorder %v444, 112
      %v562 = vsel %vm561, %v558, %v560
      %v563 = vsel %vm561, %v560, %v558
      %v564 = vld [vmem:[%s2 + $0x30] sm:$0xf0]
      %v565 = vld [vmem:[%s2 + $0x38] sm:$0xf0]
      %v568 = vrot.slane %v564, 4
      %v569 = vrot.slane %v565, 4
      %v572 = vmul.f32 %v562, %v568
      %v573 = vmul.f32 %v563, %v569
      %v576 = vrot.slane %v572, 4
      %v577 = vrot.slane %v573, 4
      %580 = vst [vmem:[#allocation2 + $0x30] sm:$0xf0] %v576
      %581 = vst [vmem:[#allocation2 + $0x38] sm:$0xf0] %v577
      %582 = vrot.lane.b32.xlu0 %v434, 111
      %v583 = vpop.permute.xlu0 %582
      %584 = vrot.lane.b32.xlu0 %v437, 111
      %v585 = vpop.permute.xlu0 %584
      %vm586 = vcmp.lt.s32.totalorder %v444, 111
      %v587 = vsel %vm586, %v583, %v585
      %v588 = vsel %vm586, %v585, %v583
      %v589 = vld [vmem:[%s2 + $0x40] sm:$0xf]
      %v590 = vld [vmem:[%s2 + $0x48] sm:$0xf]
      %v591 = vmul.f32 %v587, %v589
      %v592 = vmul.f32 %v588, %v590
      %593 = vst [vmem:[#allocation2 + $0x40] sm:$0xf] %v591
      %594 = vst [vmem:[#allocation2 + $0x48] sm:$0xf] %v592
      %v595 = vld [vmem:[#allocation2] sm:$0xff]
      %v596 = vld [vmem:[#allocation2 + $0x8] sm:$0xff]
      %v597 = vld [vmem:[#allocation2 + $0x10] sm:$0xff]
      %v598 = vld [vmem:[#allocation2 + $0x18] sm:$0xff]
      %v599 = vld [vmem:[#allocation2 + $0x20] sm:$0xff]
      %v600 = vld [vmem:[#allocation2 + $0x28] sm:$0xff]
      %v601 = vld [vmem:[#allocation2 + $0x30] sm:$0xff]
      %v602 = vld [vmem:[#allocation2 + $0x38] sm:$0xff]
      %v603 = vld [vmem:[#allocation2 + $0x40] sm:$0xf]
      %v604 = vld [vmem:[#allocation2 + $0x48] sm:$0xf]
      %606 = vset.pattern.permute.xlu0 0
      %607 = vperm.xlu0 %606, %v433
      %v608 = vpop.permute.xlu0 %607
      %vm610 = vcmask 293888
      %v612 = vsel %vm610, %v432, 0
      %vm614 = vcmask 1043456
      %v616 = vsel %vm614, %v603, 0
      %v619 = vsel %vm614, %v604, 0
      %621 = vmatprep.subr.mxu0 0.0
      %622 = vmatpush1.msra.mxu0 0.0
      %623 = vmatprep.subr.mxu0 0.0
      %624 = vmatpush1.msra.mxu0 0.0
      %625 = vmatprep.subr.mxu0 0.0
      %626 = vmatpush1.msra.mxu0 0.0
      %627 = vmatprep.subr.mxu0 0.0
      %628 = vmatpush1.msra.mxu0 0.0
      %629 = vmatprep.subr.mxu0 0.0
      %630 = vmatpush1.msra.mxu0 0.0
      %631 = vmatprep.subr.mxu0 0.0
      %632 = vmatpush1.msra.mxu0 0.0
      %633 = vmatprep.subr.mxu0 0.0
      %634 = vmatpush1.msra.mxu0 0.0
      %635 = vmatprep.subr.mxu0 0.0
      %636 = vmatpush1.msra.mxu0 0.0
      %637 = vmatprep.subr.mxu0 0.0
      %638 = vmatpush1.msra.mxu0 0.0
      %639 = vmatprep.subr.mxu0 0.0
      %640 = vmatpush1.msra.mxu0 0.0
      %641 = vmatprep.subr.mxu0 0.0
      %642 = vmatpush1.msra.mxu0 0.0
      %643 = vmatprep.subr.mxu0 %v619
      %644 = vmatpush1.msra.mxu0 %v616
      %645 = vmatprep.subr.mxu0 %v602
      %646 = vmatpush1.msra.mxu0 %v601
      %647 = vmatprep.subr.mxu0 %v600
      %648 = vmatpush1.msra.mxu0 %v599
      %649 = vmatprep.subr.mxu0 %v598
      %650 = vmatpush1.msra.mxu0 %v597
      %651 = vmatprep.subr.mxu0 %v596
      %652 = vmatpush1.msra.mxu0 %v595
      %653 = vmatprep.subr.mxu0 0.0
      %654 = vmatpush2.msra.mxu0 0.0
      %655 = vmatprep.subr.mxu0 0.0
      %656 = vmatpush2.msra.mxu0 0.0
      %657 = vmatprep.subr.mxu0 0.0
      %658 = vmatpush2.msra.mxu0 0.0
      %659 = vmatprep.subr.mxu0 0.0
      %660 = vmatpush2.msra.mxu0 0.0
      %661 = vmatprep.subr.mxu0 0.0
      %662 = vmatpush2.msra.mxu0 0.0
      %663 = vmatprep.subr.mxu0 0.0
      %664 = vmatpush2.msra.mxu0 0.0
      %665 = vmatprep.subr.mxu0 0.0
      %666 = vmatpush2.msra.mxu0 0.0
      %667 = vmatprep.subr.mxu0 0.0
      %668 = vmatpush2.msra.mxu0 0.0
      %669 = vmatprep.subr.mxu0 0.0
      %670 = vmatpush2.msra.mxu0 0.0
      %671 = vmatprep.subr.mxu0 0.0
      %672 = vmatpush2.msra.mxu0 0.0
      %673 = vmatprep.subr.mxu0 0.0
      %674 = vmatpush2.msra.mxu0 0.0
      %675 = vmatprep.subr.mxu0 0.0
      %676 = vmatpush2.msra.mxu0 0.0
      %677 = vmatprep.subr.mxu0 0.0
      %678 = vmatpush2.msra.mxu0 0.0
      %679 = vmatprep.subr.mxu0 0.0
      %680 = vmatpush2.msra.mxu0 0.0
      %681 = vmatprep.subr.mxu0 0.0
      %682 = vmatpush2.msra.mxu0 0.0
      %683 = vmatprep.subr.mxu0 0.0
      %684 = vmatpush2.msra.mxu0 0.0
      %685 = vmatprep.mubr.f32.mxu0 0.0
      %686 = vmatmul.mubr.f32.gmra.mxu0 %v612
      %v687 = vpop.f32.mrf.mxu0
      %v688 = vadd.f32 %v608, %v687
      %v689 = vpop.f32.mrf.mxu0
      %v690 = vadd.f32 %v608, %v689
      %691 = vdwg.mxu0
      %v692 = vtanh.pop %v688
      %v693 = vtanh.pop %v690
      %v695 = vcombine.high %v435, %v435
      %697 = vrot.lane.b32.xlu0 %v435, 17
      %v698 = vpop.permute.xlu0 %697
      %699 = vrot.lane.b32.xlu0 %v695, 17
      %v700 = vpop.permute.xlu0 %699
      %v701 = vsel %vm445, %v698, %v700
      %v702 = vsel %vm445, %v700, %v698
      %v703 = vld [vmem:[%s2] sm:$0xf]
      %v704 = vld [vmem:[%s2 + $0x8] sm:$0xf]
      %v705 = vmul.f32 %v702, %v703
      %v706 = vmul.f32 %v701, %v704
      %707 = vst [vmem:[#allocation2] sm:$0xf] %v705
      %708 = vst [vmem:[#allocation2 + $0x8] sm:$0xf] %v706
      %709 = vrot.lane.b32.xlu0 %v435, 16
      %v710 = vpop.permute.xlu0 %709
      %711 = vrot.lane.b32.xlu0 %v695, 16
      %v712 = vpop.permute.xlu0 %711
      %v713 = vsel %vm458, %v710, %v712
      %v714 = vsel %vm458, %v712, %v710
      %v715 = vld [vmem:[%s2] sm:$0xf0]
      %v716 = vld [vmem:[%s2 + $0x8] sm:$0xf0]
      %v719 = vrot.slane %v715, 4
      %v720 = vrot.slane %v716, 4
      %v723 = vmul.f32 %v714, %v719
      %v724 = vmul.f32 %v713, %v720
      %v727 = vrot.slane %v723, 4
      %v728 = vrot.slane %v724, 4
      %731 = vst [vmem:[#allocation2] sm:$0xf0] %v727
      %732 = vst [vmem:[#allocation2 + $0x8] sm:$0xf0] %v728
      %733 = vrot.lane.b32.xlu0 %v435, 15
      %v734 = vpop.permute.xlu0 %733
      %735 = vrot.lane.b32.xlu0 %v695, 15
      %v736 = vpop.permute.xlu0 %735
      %v737 = vsel %vm483, %v734, %v736
      %v738 = vsel %vm483, %v736, %v734
      %v739 = vld [vmem:[%s2 + $0x10] sm:$0xf]
      %v740 = vld [vmem:[%s2 + $0x18] sm:$0xf]
      %v741 = vmul.f32 %v738, %v739
      %v742 = vmul.f32 %v737, %v740
      %743 = vst [vmem:[#allocation2 + $0x10] sm:$0xf] %v741
      %744 = vst [vmem:[#allocation2 + $0x18] sm:$0xf] %v742
      %745 = vrot.lane.b32.xlu0 %v435, 1
      %v746 = vpop.permute.xlu0 %745
      %747 = vrot.lane.b32.xlu0 %v695, 1
      %v748 = vpop.permute.xlu0 %747
      %v749 = vsel %vm496, %v746, %v748
      %v750 = vsel %vm496, %v748, %v746
      %v751 = vld [vmem:[%s2 + $0x10] sm:$0xf0]
      %v752 = vld [vmem:[%s2 + $0x18] sm:$0xf0]
      %v755 = vrot.slane %v751, 4
      %v756 = vrot.slane %v752, 4
      %v759 = vmul.f32 %v750, %v755
      %v760 = vmul.f32 %v749, %v756
      %v763 = vrot.slane %v759, 4
      %v764 = vrot.slane %v760, 4
      %767 = vst [vmem:[#allocation2 + $0x10] sm:$0xf0] %v763
      %768 = vst [vmem:[#allocation2 + $0x18] sm:$0xf0] %v764
      %769 = vst [vmem:[#allocation2 + $0x20] sm:$0xf] %v435
      %770 = vst [vmem:[#allocation2 + $0x28] sm:$0xf] %v695
      %771 = vrot.lane.b32.xlu0 %v435, 127
      %v772 = vpop.permute.xlu0 %771
      %773 = vrot.lane.b32.xlu0 %v695, 127
      %v774 = vpop.permute.xlu0 %773
      %v775 = vsel %vm523, %v772, %v774
      %v776 = vsel %vm523, %v774, %v772
      %v777 = vld [vmem:[%s2 + $0x20] sm:$0xf0]
      %v778 = vld [vmem:[%s2 + $0x28] sm:$0xf0]
      %v781 = vrot.slane %v777, 4
      %v782 = vrot.slane %v778, 4
      %v785 = vmul.f32 %v775, %v781
      %v786 = vmul.f32 %v776, %v782
      %v789 = vrot.slane %v785, 4
      %v790 = vrot.slane %v786, 4
      %793 = vst [vmem:[#allocation2 + $0x20] sm:$0xf0] %v789
      %794 = vst [vmem:[#allocation2 + $0x28] sm:$0xf0] %v790
      %795 = vrot.lane.b32.xlu0 %v435, 113
      %v796 = vpop.permute.xlu0 %795
      %797 = vrot.lane.b32.xlu0 %v695, 113
      %v798 = vpop.permute.xlu0 %797
      %v799 = vsel %vm548, %v796, %v798
      %v800 = vsel %vm548, %v798, %v796
      %v801 = vld [vmem:[%s2 + $0x30] sm:$0xf]
      %v802 = vld [vmem:[%s2 + $0x38] sm:$0xf]
      %v803 = vmul.f32 %v799, %v801
      %v804 = vmul.f32 %v800, %v802
      %805 = vst [vmem:[#allocation2 + $0x30] sm:$0xf] %v803
      %806 = vst [vmem:[#allocation2 + $0x38] sm:$0xf] %v804
      %807 = vrot.lane.b32.xlu0 %v435, 112
      %v808 = vpop.permute.xlu0 %807
      %809 = vrot.lane.b32.xlu0 %v695, 112
      %v810 = vpop.permute.xlu0 %809
      %v811 = vsel %vm561, %v808, %v810
      %v812 = vsel %vm561, %v810, %v808
      %v813 = vld [vmem:[%s2 + $0x30] sm:$0xf0]
      %v814 = vld [vmem:[%s2 + $0x38] sm:$0xf0]
      %v817 = vrot.slane %v813, 4
      %v818 = vrot.slane %v814, 4
      %v821 = vmul.f32 %v811, %v817
      %v822 = vmul.f32 %v812, %v818
      %v825 = vrot.slane %v821, 4
      %v826 = vrot.slane %v822, 4
      %829 = vst [vmem:[#allocation2 + $0x30] sm:$0xf0] %v825
      %830 = vst [vmem:[#allocation2 + $0x38] sm:$0xf0] %v826
      %831 = vrot.lane.b32.xlu0 %v435, 111
      %v832 = vpop.permute.xlu0 %831
      %833 = vrot.lane.b32.xlu0 %v695, 111
      %v834 = vpop.permute.xlu0 %833
      %v835 = vsel %vm586, %v832, %v834
      %v836 = vsel %vm586, %v834, %v832
      %v837 = vld [vmem:[%s2 + $0x40] sm:$0xf]
      %v838 = vld [vmem:[%s2 + $0x48] sm:$0xf]
      %v839 = vmul.f32 %v835, %v837
      %v840 = vmul.f32 %v836, %v838
      %841 = vst [vmem:[#allocation2 + $0x40] sm:$0xf] %v839
      %842 = vst [vmem:[#allocation2 + $0x48] sm:$0xf] %v840
      %v843 = vld [vmem:[#allocation2] sm:$0xff]
      %v844 = vld [vmem:[#allocation2 + $0x8] sm:$0xff]
      %v845 = vld [vmem:[#allocation2 + $0x10] sm:$0xff]
      %v846 = vld [vmem:[#allocation2 + $0x18] sm:$0xff]
      %v847 = vld [vmem:[#allocation2 + $0x20] sm:$0xff]
      %v848 = vld [vmem:[#allocation2 + $0x28] sm:$0xff]
      %v849 = vld [vmem:[#allocation2 + $0x30] sm:$0xff]
      %v850 = vld [vmem:[#allocation2 + $0x38] sm:$0xff]
      %v851 = vld [vmem:[#allocation2 + $0x40] sm:$0xf]
      %v852 = vld [vmem:[#allocation2 + $0x48] sm:$0xf]
      %v853 = vld [vmem:[%s5] sm:$0xff]
      %v854 = vld [vmem:[%s6] sm:$0xff]
      %856 = vset.pattern.permute.xlu0 0
      %857 = vperm.xlu0 %856, %v854
      %v858 = vpop.permute.xlu0 %857
      %v861 = vsel %vm610, %v853, 0
      %v864 = vsel %vm614, %v851, 0
      %v867 = vsel %vm614, %v852, 0
      %869 = vmatprep.subr.mxu0 0.0
      %870 = vmatpush1.msra.mxu0 0.0
      %871 = vmatprep.subr.mxu0 0.0
      %872 = vmatpush1.msra.mxu0 0.0
      %873 = vmatprep.subr.mxu0 0.0
      %874 = vmatpush1.msra.mxu0 0.0
      %875 = vmatprep.subr.mxu0 0.0
      %876 = vmatpush1.msra.mxu0 0.0
      %877 = vmatprep.subr.mxu0 0.0
      %878 = vmatpush1.msra.mxu0 0.0
      %879 = vmatprep.subr.mxu0 0.0
      %880 = vmatpush1.msra.mxu0 0.0
      %881 = vmatprep.subr.mxu0 0.0
      %882 = vmatpush1.msra.mxu0 0.0
      %883 = vmatprep.subr.mxu0 0.0
      %884 = vmatpush1.msra.mxu0 0.0
      %885 = vmatprep.subr.mxu0 0.0
      %886 = vmatpush1.msra.mxu0 0.0
      %887 = vmatprep.subr.mxu0 0.0
      %888 = vmatpush1.msra.mxu0 0.0
      %889 = vmatprep.subr.mxu0 0.0
      %890 = vmatpush1.msra.mxu0 0.0
      %891 = vmatprep.subr.mxu0 %v867
      %892 = vmatpush1.msra.mxu0 %v864
      %893 = vmatprep.subr.mxu0 %v850
      %894 = vmatpush1.msra.mxu0 %v849
      %895 = vmatprep.subr.mxu0 %v848
      %896 = vmatpush1.msra.mxu0 %v847
      %897 = vmatprep.subr.mxu0 %v846
      %898 = vmatpush1.msra.mxu0 %v845
      %899 = vmatprep.subr.mxu0 %v844
      %900 = vmatpush1.msra.mxu0 %v843
      %901 = vmatprep.subr.mxu0 0.0
      %902 = vmatpush2.msra.mxu0 0.0
      %903 = vmatprep.subr.mxu0 0.0
      %904 = vmatpush2.msra.mxu0 0.0
      %905 = vmatprep.subr.mxu0 0.0
      %906 = vmatpush2.msra.mxu0 0.0
      %907 = vmatprep.subr.mxu0 0.0
      %908 = vmatpush2.msra.mxu0 0.0
      %909 = vmatprep.subr.mxu0 0.0
      %910 = vmatpush2.msra.mxu0 0.0
      %911 = vmatprep.subr.mxu0 0.0
      %912 = vmatpush2.msra.mxu0 0.0
      %913 = vmatprep.subr.mxu0 0.0
      %914 = vmatpush2.msra.mxu0 0.0
      %915 = vmatprep.subr.mxu0 0.0
      %916 = vmatpush2.msra.mxu0 0.0
      %917 = vmatprep.subr.mxu0 0.0
      %918 = vmatpush2.msra.mxu0 0.0
      %919 = vmatprep.subr.mxu0 0.0
      %920 = vmatpush2.msra.mxu0 0.0
      %921 = vmatprep.subr.mxu0 0.0
      %922 = vmatpush2.msra.mxu0 0.0
      %923 = vmatprep.subr.mxu0 0.0
      %924 = vmatpush2.msra.mxu0 0.0
      %925 = vmatprep.subr.mxu0 0.0
      %926 = vmatpush2.msra.mxu0 0.0
      %927 = vmatprep.subr.mxu0 0.0
      %928 = vmatpush2.msra.mxu0 0.0
      %929 = vmatprep.subr.mxu0 0.0
      %930 = vmatpush2.msra.mxu0 0.0
      %931 = vmatprep.subr.mxu0 0.0
      %932 = vmatpush2.msra.mxu0 0.0
      %933 = vmatprep.mubr.f32.mxu0 0.0
      %934 = vmatmul.mubr.f32.gmra.mxu0 %v861
      %v935 = vpop.f32.mrf.mxu0
      %v936 = vadd.f32 %v858, %v935
      %v937 = vpop.f32.mrf.mxu0
      %v938 = vadd.f32 %v858, %v937
      %939 = vdwg.mxu0
      %v940 = vtanh.pop %v936
      %v941 = vtanh.pop %v938
      %v944 = vcombine.low %v940, %v941
      %946 = vst [vmem:[%s421] sm:$0xff] %v944
      %947 = vrot.lane.b32.xlu0 %v692, 17
      %v948 = vpop.permute.xlu0 %947
      %949 = vrot.lane.b32.xlu0 %v693, 17
      %v950 = vpop.permute.xlu0 %949
      %v951 = vsel %vm445, %v948, %v950
      %v952 = vsel %vm445, %v950, %v948
      %v953 = vld [vmem:[%s2] sm:$0xf]
      %v954 = vld [vmem:[%s2 + $0x8] sm:$0xf]
      %v955 = vmul.f32 %v952, %v953
      %v956 = vmul.f32 %v951, %v954
      %957 = vst [vmem:[#allocation2] sm:$0xf] %v955
      %958 = vst [vmem:[#allocation2 + $0x8] sm:$0xf] %v956
      %959 = vrot.lane.b32.xlu0 %v692, 16
      %v960 = vpop.permute.xlu0 %959
      %961 = vrot.lane.b32.xlu0 %v693, 16
      %v962 = vpop.permute.xlu0 %961
      %v963 = vsel %vm458, %v960, %v962
      %v964 = vsel %vm458, %v962, %v960
      %v965 = vld [vmem:[%s2] sm:$0xf0]
      %v966 = vld [vmem:[%s2 + $0x8] sm:$0xf0]
      %v969 = vrot.slane %v965, 4
      %v970 = vrot.slane %v966, 4
      %v973 = vmul.f32 %v964, %v969
      %v974 = vmul.f32 %v963, %v970
      %v977 = vrot.slane %v973, 4
      %v978 = vrot.slane %v974, 4
      %981 = vst [vmem:[#allocation2] sm:$0xf0] %v977
      %982 = vst [vmem:[#allocation2 + $0x8] sm:$0xf0] %v978
      %983 = vrot.lane.b32.xlu0 %v692, 15
      %v984 = vpop.permute.xlu0 %983
      %985 = vrot.lane.b32.xlu0 %v693, 15
      %v986 = vpop.permute.xlu0 %985
      %v987 = vsel %vm483, %v984, %v986
      %v988 = vsel %vm483, %v986, %v984
      %v989 = vld [vmem:[%s2 + $0x10] sm:$0xf]
      %v990 = vld [vmem:[%s2 + $0x18] sm:$0xf]
      %v991 = vmul.f32 %v988, %v989
      %v992 = vmul.f32 %v987, %v990
      %993 = vst [vmem:[#allocation2 + $0x10] sm:$0xf] %v991
      %994 = vst [vmem:[#allocation2 + $0x18] sm:$0xf] %v992
      %995 = vrot.lane.b32.xlu0 %v692, 1
      %v996 = vpop.permute.xlu0 %995
      %997 = vrot.lane.b32.xlu0 %v693, 1
      %v998 = vpop.permute.xlu0 %997
      %v999 = vsel %vm496, %v996, %v998
      %v1000 = vsel %vm496, %v998, %v996
      %v1001 = vld [vmem:[%s2 + $0x10] sm:$0xf0]
      %v1002 = vld [vmem:[%s2 + $0x18] sm:$0xf0]
      %v1005 = vrot.slane %v1001, 4
      %v1006 = vrot.slane %v1002, 4
      %v1009 = vmul.f32 %v1000, %v1005
      %v1010 = vmul.f32 %v999, %v1006
      %v1013 = vrot.slane %v1009, 4
      %v1014 = vrot.slane %v1010, 4
      %1017 = vst [vmem:[#allocation2 + $0x10] sm:$0xf0] %v1013
      %1018 = vst [vmem:[#allocation2 + $0x18] sm:$0xf0] %v1014
      %1019 = vst [vmem:[#allocation2 + $0x20] sm:$0xf] %v692
      %1020 = vst [vmem:[#allocation2 + $0x28] sm:$0xf] %v693
      %1021 = vrot.lane.b32.xlu0 %v692, 127
      %v1022 = vpop.permute.xlu0 %1021
      %1023 = vrot.lane.b32.xlu0 %v693, 127
      %v1024 = vpop.permute.xlu0 %1023
      %v1025 = vsel %vm523, %v1022, %v1024
      %v1026 = vsel %vm523, %v1024, %v1022
      %v1027 = vld [vmem:[%s2 + $0x20] sm:$0xf0]
      %v1028 = vld [vmem:[%s2 + $0x28] sm:$0xf0]
      %v1031 = vrot.slane %v1027, 4
      %v1032 = vrot.slane %v1028, 4
      %v1035 = vmul.f32 %v1025, %v1031
      %v1036 = vmul.f32 %v1026, %v1032
      %v1039 = vrot.slane %v1035, 4
      %v1040 = vrot.slane %v1036, 4
      %1043 = vst [vmem:[#allocation2 + $0x20] sm:$0xf0] %v1039
      %1044 = vst [vmem:[#allocation2 + $0x28] sm:$0xf0] %v1040
      %1045 = vrot.lane.b32.xlu0 %v692, 113
      %v1046 = vpop.permute.xlu0 %1045
      %1047 = vrot.lane.b32.xlu0 %v693, 113
      %v1048 = vpop.permute.xlu0 %1047
      %v1049 = vsel %vm548, %v1046, %v1048
      %v1050 = vsel %vm548, %v1048, %v1046
      %v1051 = vld [vmem:[%s2 + $0x30] sm:$0xf]
      %v1052 = vld [vmem:[%s2 + $0x38] sm:$0xf]
      %v1053 = vmul.f32 %v1049, %v1051
      %v1054 = vmul.f32 %v1050, %v1052
      %1055 = vst [vmem:[#allocation2 + $0x30] sm:$0xf] %v1053
      %1056 = vst [vmem:[#allocation2 + $0x38] sm:$0xf] %v1054
      %1057 = vrot.lane.b32.xlu0 %v692, 112
      %v1058 = vpop.permute.xlu0 %1057
      %1059 = vrot.lane.b32.xlu0 %v693, 112
      %v1060 = vpop.permute.xlu0 %1059
      %v1061 = vsel %vm561, %v1058, %v1060
      %v1062 = vsel %vm561, %v1060, %v1058
      %v1063 = vld [vmem:[%s2 + $0x30] sm:$0xf0]
      %v1064 = vld [vmem:[%s2 + $0x38] sm:$0xf0]
      %v1067 = vrot.slane %v1063, 4
      %v1068 = vrot.slane %v1064, 4
      %v1071 = vmul.f32 %v1061, %v1067
      %v1072 = vmul.f32 %v1062, %v1068
      %v1075 = vrot.slane %v1071, 4
      %v1076 = vrot.slane %v1072, 4
      %1079 = vst [vmem:[#allocation2 + $0x30] sm:$0xf0] %v1075
      %1080 = vst [vmem:[#allocation2 + $0x38] sm:$0xf0] %v1076
      %1081 = vrot.lane.b32.xlu0 %v692, 111
      %v1082 = vpop.permute.xlu0 %1081
      %1083 = vrot.lane.b32.xlu0 %v693, 111
      %v1084 = vpop.permute.xlu0 %1083
      %v1085 = vsel %vm586, %v1082, %v1084
      %v1086 = vsel %vm586, %v1084, %v1082
      %v1087 = vld [vmem:[%s2 + $0x40] sm:$0xf]
      %v1088 = vld [vmem:[%s2 + $0x48] sm:$0xf]
      %v1089 = vmul.f32 %v1085, %v1087
      %v1090 = vmul.f32 %v1086, %v1088
      %1091 = vst [vmem:[#allocation2 + $0x40] sm:$0xf] %v1089
      %1092 = vst [vmem:[#allocation2 + $0x48] sm:$0xf] %v1090
      %v1093 = vld [vmem:[#allocation2] sm:$0xff]
      %v1094 = vld [vmem:[#allocation2 + $0x8] sm:$0xff]
      %v1095 = vld [vmem:[#allocation2 + $0x10] sm:$0xff]
      %v1096 = vld [vmem:[#allocation2 + $0x18] sm:$0xff]
      %v1097 = vld [vmem:[#allocation2 + $0x20] sm:$0xff]
      %v1098 = vld [vmem:[#allocation2 + $0x28] sm:$0xff]
      %v1099 = vld [vmem:[#allocation2 + $0x30] sm:$0xff]
      %v1100 = vld [vmem:[#allocation2 + $0x38] sm:$0xff]
      %v1101 = vld [vmem:[#allocation2 + $0x40] sm:$0xf]
      %v1102 = vld [vmem:[#allocation2 + $0x48] sm:$0xf]
      %v1103 = vld [vmem:[%s7] sm:$0x1f]
      %v1104 = vld [vmem:[%s8] sm:$0x1f]
      %1106 = vset.pattern.permute.xlu0 0
      %1107 = vperm.xlu0 %1106, %v1104
      %v1108 = vpop.permute.xlu0 %1107
      %v1111 = vsel %vm610, %v1103, 0
      %v1114 = vsel %vm614, %v1101, 0
      %v1117 = vsel %vm614, %v1102, 0
      %1119 = vmatprep.subr.mxu0 0.0
      %1120 = vmatpush1.msra.mxu0 0.0
      %1121 = vmatprep.subr.mxu0 0.0
      %1122 = vmatpush1.msra.mxu0 0.0
      %1123 = vmatprep.subr.mxu0 0.0
      %1124 = vmatpush1.msra.mxu0 0.0
      %1125 = vmatprep.subr.mxu0 0.0
      %1126 = vmatpush1.msra.mxu0 0.0
      %1127 = vmatprep.subr.mxu0 0.0
      %1128 = vmatpush1.msra.mxu0 0.0
      %1129 = vmatprep.subr.mxu0 0.0
      %1130 = vmatpush1.msra.mxu0 0.0
      %1131 = vmatprep.subr.mxu0 0.0
      %1132 = vmatpush1.msra.mxu0 0.0
      %1133 = vmatprep.subr.mxu0 0.0
      %1134 = vmatpush1.msra.mxu0 0.0
      %1135 = vmatprep.subr.mxu0 0.0
      %1136 = vmatpush1.msra.mxu0 0.0
      %1137 = vmatprep.subr.mxu0 0.0
      %1138 = vmatpush1.msra.mxu0 0.0
      %1139 = vmatprep.subr.mxu0 0.0
      %1140 = vmatpush1.msra.mxu0 0.0
      %1141 = vmatprep.subr.mxu0 %v1117
      %1142 = vmatpush1.msra.mxu0 %v1114
      %1143 = vmatprep.subr.mxu0 %v1100
      %1144 = vmatpush1.msra.mxu0 %v1099
      %1145 = vmatprep.subr.mxu0 %v1098
      %1146 = vmatpush1.msra.mxu0 %v1097
      %1147 = vmatprep.subr.mxu0 %v1096
      %1148 = vmatpush1.msra.mxu0 %v1095
      %1149 = vmatprep.subr.mxu0 %v1094
      %1150 = vmatpush1.msra.mxu0 %v1093
      %1151 = vmatprep.subr.mxu0 0.0
      %1152 = vmatpush2.msra.mxu0 0.0
      %1153 = vmatprep.subr.mxu0 0.0
      %1154 = vmatpush2.msra.mxu0 0.0
      %1155 = vmatprep.subr.mxu0 0.0
      %1156 = vmatpush2.msra.mxu0 0.0
      %1157 = vmatprep.subr.mxu0 0.0
      %1158 = vmatpush2.msra.mxu0 0.0
      %1159 = vmatprep.subr.mxu0 0.0
      %1160 = vmatpush2.msra.mxu0 0.0
      %1161 = vmatprep.subr.mxu0 0.0
      %1162 = vmatpush2.msra.mxu0 0.0
      %1163 = vmatprep.subr.mxu0 0.0
      %1164 = vmatpush2.msra.mxu0 0.0
      %1165 = vmatprep.subr.mxu0 0.0
      %1166 = vmatpush2.msra.mxu0 0.0
      %1167 = vmatprep.subr.mxu0 0.0
      %1168 = vmatpush2.msra.mxu0 0.0
      %1169 = vmatprep.subr.mxu0 0.0
      %1170 = vmatpush2.msra.mxu0 0.0
      %1171 = vmatprep.subr.mxu0 0.0
      %1172 = vmatpush2.msra.mxu0 0.0
      %1173 = vmatprep.subr.mxu0 0.0
      %1174 = vmatpush2.msra.mxu0 0.0
      %1175 = vmatprep.subr.mxu0 0.0
      %1176 = vmatpush2.msra.mxu0 0.0
      %1177 = vmatprep.subr.mxu0 0.0
      %1178 = vmatpush2.msra.mxu0 0.0
      %1179 = vmatprep.subr.mxu0 0.0
      %1180 = vmatpush2.msra.mxu0 0.0
      %1181 = vmatprep.subr.mxu0 0.0
      %1182 = vmatpush2.msra.mxu0 0.0
      %1183 = vmatprep.mubr.f32.mxu0 0.0
      %1184 = vmatmul.mubr.f32.gmra.mxu0 %v1111
      %v1185 = vpop.f32.mrf.mxu0
      %v1186 = vadd.f32 %v1108, %v1185
      %v1187 = vpop.f32.mrf.mxu0
      %v1188 = vadd.f32 %v1108, %v1187
      %1189 = vdwg.mxu0
      %v1190 = vlaneseq
      %v1191 = vshrl.u32 %v1190, 7
      %vm1192 = vcmp.eq.s32.totalorder %v1191, 0
      %v1193 = vxor.u32 %v1186, 2147483648
      %v1194 = vxor.u32 %v1188, 2147483648
      %v1195 = vmul.f32 %v1193, 1.442695
      %v1196 = vpow.pop %v1195
      %v1197 = vmul.f32 %v1194, 1.442695
      %v1198 = vpow.pop %v1197
      %v1199 = vadd.f32 %v1196, 1.0
      %v1200 = vadd.f32 %v1198, 1.0
      %v1201 = vrcp.pop %v1199
      %v1202 = vmul.f32 1.0, %v1201
      %v1203 = vrcp.pop %v1200
      %v1204 = vmul.f32 1.0, %v1203
      %v1205 = vtanh.pop %v1186
      %v1206 = vtanh.pop %v1188
      %v1207 = vsel %vm1192, %v1202, %v1205
      %v1208 = vsel %vm1192, %v1204, %v1206
      %1209 = vst [vmem:[%s426] sm:$0x1f] %v1207
      %1210 = vst [vmem:[%s426 + $0x8] sm:$0x1f] %v1208
      %v1211 = vrot.slane %v940, 4
      %v1212 = vrot.slane %v941, 4
      %1215 = vrot.lane.b32.xlu0 %v1211, 17
      %v1216 = vpop.permute.xlu0 %1215
      %1217 = vrot.lane.b32.xlu0 %v1212, 17
      %v1218 = vpop.permute.xlu0 %1217
      %v1219 = vsel %vm445, %v1216, %v1218
      %v1220 = vsel %vm445, %v1218, %v1216
      %v1221 = vld [vmem:[%s2] sm:$0xf]
      %v1222 = vld [vmem:[%s2 + $0x8] sm:$0xf]
      %v1223 = vmul.f32 %v1220, %v1221
      %v1224 = vmul.f32 %v1219, %v1222
      %1225 = vst [vmem:[#allocation2] sm:$0xf] %v1223
      %1226 = vst [vmem:[#allocation2 + $0x8] sm:$0xf] %v1224
      %1227 = vrot.lane.b32.xlu0 %v1211, 16
      %v1228 = vpop.permute.xlu0 %1227
      %1229 = vrot.lane.b32.xlu0 %v1212, 16
      %v1230 = vpop.permute.xlu0 %1229
      %v1231 = vsel %vm458, %v1228, %v1230
      %v1232 = vsel %vm458, %v1230, %v1228
      %v1233 = vld [vmem:[%s2] sm:$0xf0]
      %v1234 = vld [vmem:[%s2 + $0x8] sm:$0xf0]
      %v1237 = vrot.slane %v1233, 4
      %v1238 = vrot.slane %v1234, 4
      %v1241 = vmul.f32 %v1232, %v1237
      %v1242 = vmul.f32 %v1231, %v1238
      %v1245 = vrot.slane %v1241, 4
      %v1246 = vrot.slane %v1242, 4
      %1249 = vst [vmem:[#allocation2] sm:$0xf0] %v1245
      %1250 = vst [vmem:[#allocation2 + $0x8] sm:$0xf0] %v1246
      %1251 = vrot.lane.b32.xlu0 %v1211, 15
      %v1252 = vpop.permute.xlu0 %1251
      %1253 = vrot.lane.b32.xlu0 %v1212, 15
      %v1254 = vpop.permute.xlu0 %1253
      %v1255 = vsel %vm483, %v1252, %v1254
      %v1256 = vsel %vm483, %v1254, %v1252
      %v1257 = vld [vmem:[%s2 + $0x10] sm:$0xf]
      %v1258 = vld [vmem:[%s2 + $0x18] sm:$0xf]
      %v1259 = vmul.f32 %v1256, %v1257
      %v1260 = vmul.f32 %v1255, %v1258
      %1261 = vst [vmem:[#allocation2 + $0x10] sm:$0xf] %v1259
      %1262 = vst [vmem:[#allocation2 + $0x18] sm:$0xf] %v1260
      %1263 = vrot.lane.b32.xlu0 %v1211, 1
      %v1264 = vpop.permute.xlu0 %1263
      %1265 = vrot.lane.b32.xlu0 %v1212, 1
      %v1266 = vpop.permute.xlu0 %1265
      %v1267 = vsel %vm496, %v1264, %v1266
      %v1268 = vsel %vm496, %v1266, %v1264
      %v1269 = vld [vmem:[%s2 + $0x10] sm:$0xf0]
      %v1270 = vld [vmem:[%s2 + $0x18] sm:$0xf0]
      %v1273 = vrot.slane %v1269, 4
      %v1274 = vrot.slane %v1270, 4
      %v1277 = vmul.f32 %v1268, %v1273
      %v1278 = vmul.f32 %v1267, %v1274
      %v1281 = vrot.slane %v1277, 4
      %v1282 = vrot.slane %v1278, 4
      %1285 = vst [vmem:[#allocation2 + $0x10] sm:$0xf0] %v1281
      %1286 = vst [vmem:[#allocation2 + $0x18] sm:$0xf0] %v1282
      %1287 = vst [vmem:[#allocation2 + $0x20] sm:$0xf] %v1211
      %1288 = vst [vmem:[#allocation2 + $0x28] sm:$0xf] %v1212
      %1289 = vrot.lane.b32.xlu0 %v1211, 127
      %v1290 = vpop.permute.xlu0 %1289
      %1291 = vrot.lane.b32.xlu0 %v1212, 127
      %v1292 = vpop.permute.xlu0 %1291
      %v1293 = vsel %vm523, %v1290, %v1292
      %v1294 = vsel %vm523, %v1292, %v1290
      %v1295 = vld [vmem:[%s2 + $0x20] sm:$0xf0]
      %v1296 = vld [vmem:[%s2 + $0x28] sm:$0xf0]
      %v1299 = vrot.slane %v1295, 4
      %v1300 = vrot.slane %v1296, 4
      %v1303 = vmul.f32 %v1293, %v1299
      %v1304 = vmul.f32 %v1294, %v1300
      %v1307 = vrot.slane %v1303, 4
      %v1308 = vrot.slane %v1304, 4
      %1311 = vst [vmem:[#allocation2 + $0x20] sm:$0xf0] %v1307
      %1312 = vst [vmem:[#allocation2 + $0x28] sm:$0xf0] %v1308
      %1313 = vrot.lane.b32.xlu0 %v1211, 113
      %v1314 = vpop.permute.xlu0 %1313
      %1315 = vrot.lane.b32.xlu0 %v1212, 113
      %v1316 = vpop.permute.xlu0 %1315
      %v1317 = vsel %vm548, %v1314, %v1316
      %v1318 = vsel %vm548, %v1316, %v1314
      %v1319 = vld [vmem:[%s2 + $0x30] sm:$0xf]
      %v1320 = vld [vmem:[%s2 + $0x38] sm:$0xf]
      %v1321 = vmul.f32 %v1317, %v1319
      %v1322 = vmul.f32 %v1318, %v1320
      %1323 = vst [vmem:[#allocation2 + $0x30] sm:$0xf] %v1321
      %1324 = vst [vmem:[#allocation2 + $0x38] sm:$0xf] %v1322
      %1325 = vrot.lane.b32.xlu0 %v1211, 112
      %v1326 = vpop.permute.xlu0 %1325
      %1327 = vrot.lane.b32.xlu0 %v1212, 112
      %v1328 = vpop.permute.xlu0 %1327
      %v1329 = vsel %vm561, %v1326, %v1328
      %v1330 = vsel %vm561, %v1328, %v1326
      %v1331 = vld [vmem:[%s2 + $0x30] sm:$0xf0]
      %v1332 = vld [vmem:[%s2 + $0x38] sm:$0xf0]
      %v1335 = vrot.slane %v1331, 4
      %v1336 = vrot.slane %v1332, 4
      %v1339 = vmul.f32 %v1329, %v1335
      %v1340 = vmul.f32 %v1330, %v1336
      %v1343 = vrot.slane %v1339, 4
      %v1344 = vrot.slane %v1340, 4
      %1347 = vst [vmem:[#allocation2 + $0x30] sm:$0xf0] %v1343
      %1348 = vst [vmem:[#allocation2 + $0x38] sm:$0xf0] %v1344
      %1349 = vrot.lane.b32.xlu0 %v1211, 111
      %v1350 = vpop.permute.xlu0 %1349
      %1351 = vrot.lane.b32.xlu0 %v1212, 111
      %v1352 = vpop.permute.xlu0 %1351
      %v1353 = vsel %vm586, %v1350, %v1352
      %v1354 = vsel %vm586, %v1352, %v1350
      %v1355 = vld [vmem:[%s2 + $0x40] sm:$0xf]
      %v1356 = vld [vmem:[%s2 + $0x48] sm:$0xf]
      %v1357 = vmul.f32 %v1353, %v1355
      %v1358 = vmul.f32 %v1354, %v1356
      %1359 = vst [vmem:[#allocation2 + $0x40] sm:$0xf] %v1357
      %1360 = vst [vmem:[#allocation2 + $0x48] sm:$0xf] %v1358
      %v1361 = vld [vmem:[#allocation2] sm:$0xff]
      %v1362 = vld [vmem:[#allocation2 + $0x8] sm:$0xff]
      %v1363 = vld [vmem:[#allocation2 + $0x10] sm:$0xff]
      %v1364 = vld [vmem:[#allocation2 + $0x18] sm:$0xff]
      %v1365 = vld [vmem:[#allocation2 + $0x20] sm:$0xff]
      %v1366 = vld [vmem:[#allocation2 + $0x28] sm:$0xff]
      %v1367 = vld [vmem:[#allocation2 + $0x30] sm:$0xff]
      %v1368 = vld [vmem:[#allocation2 + $0x38] sm:$0xff]
      %v1369 = vld [vmem:[#allocation2 + $0x40] sm:$0xf]
      %v1370 = vld [vmem:[#allocation2 + $0x48] sm:$0xf]
      %v1372 = vsel %vm614, %v1369, 0
      %v1375 = vsel %vm614, %v1370, 0
      %1377 = vmatprep.subr.mxu0 0.0
      %1378 = vmatpush1.msra.mxu0 0.0
      %1379 = vmatprep.subr.mxu0 0.0
      %1380 = vmatpush1.msra.mxu0 0.0
      %1381 = vmatprep.subr.mxu0 0.0
      %1382 = vmatpush1.msra.mxu0 0.0
      %1383 = vmatprep.subr.mxu0 0.0
      %1384 = vmatpush1.msra.mxu0 0.0
      %1385 = vmatprep.subr.mxu0 0.0
      %1386 = vmatpush1.msra.mxu0 0.0
      %1387 = vmatprep.subr.mxu0 0.0
      %1388 = vmatpush1.msra.mxu0 0.0
      %1389 = vmatprep.subr.mxu0 0.0
      %1390 = vmatpush1.msra.mxu0 0.0
      %1391 = vmatprep.subr.mxu0 0.0
      %1392 = vmatpush1.msra.mxu0 0.0
      %1393 = vmatprep.subr.mxu0 0.0
      %1394 = vmatpush1.msra.mxu0 0.0
      %1395 = vmatprep.subr.mxu0 0.0
      %1396 = vmatpush1.msra.mxu0 0.0
      %1397 = vmatprep.subr.mxu0 0.0
      %1398 = vmatpush1.msra.mxu0 0.0
      %1399 = vmatprep.subr.mxu0 %v1375
      %1400 = vmatpush1.msra.mxu0 %v1372
      %1401 = vmatprep.subr.mxu0 %v1368
      %1402 = vmatpush1.msra.mxu0 %v1367
      %1403 = vmatprep.subr.mxu0 %v1366
      %1404 = vmatpush1.msra.mxu0 %v1365
      %1405 = vmatprep.subr.mxu0 %v1364
      %1406 = vmatpush1.msra.mxu0 %v1363
      %1407 = vmatprep.subr.mxu0 %v1362
      %1408 = vmatpush1.msra.mxu0 %v1361
      %1409 = vmatprep.subr.mxu0 0.0
      %1410 = vmatpush2.msra.mxu0 0.0
      %1411 = vmatprep.subr.mxu0 0.0
      %1412 = vmatpush2.msra.mxu0 0.0
      %1413 = vmatprep.subr.mxu0 0.0
      %1414 = vmatpush2.msra.mxu0 0.0
      %1415 = vmatprep.subr.mxu0 0.0
      %1416 = vmatpush2.msra.mxu0 0.0
      %1417 = vmatprep.subr.mxu0 0.0
      %1418 = vmatpush2.msra.mxu0 0.0
      %1419 = vmatprep.subr.mxu0 0.0
      %1420 = vmatpush2.msra.mxu0 0.0
      %1421 = vmatprep.subr.mxu0 0.0
      %1422 = vmatpush2.msra.mxu0 0.0
      %1423 = vmatprep.subr.mxu0 0.0
      %1424 = vmatpush2.msra.mxu0 0.0
      %1425 = vmatprep.subr.mxu0 0.0
      %1426 = vmatpush2.msra.mxu0 0.0
      %1427 = vmatprep.subr.mxu0 0.0
      %1428 = vmatpush2.msra.mxu0 0.0
      %1429 = vmatprep.subr.mxu0 0.0
      %1430 = vmatpush2.msra.mxu0 0.0
      %1431 = vmatprep.subr.mxu0 0.0
      %1432 = vmatpush2.msra.mxu0 0.0
      %1433 = vmatprep.subr.mxu0 0.0
      %1434 = vmatpush2.msra.mxu0 0.0
      %1435 = vmatprep.subr.mxu0 0.0
      %1436 = vmatpush2.msra.mxu0 0.0
      %1437 = vmatprep.subr.mxu0 0.0
      %1438 = vmatpush2.msra.mxu0 0.0
      %1439 = vmatprep.subr.mxu0 0.0
      %1440 = vmatpush2.msra.mxu0 0.0
      %1441 = vmatprep.mubr.f32.mxu0 0.0
      %1442 = vmatmul.mubr.f32.gmra.mxu0 %v612
      %v1443 = vpop.f32.mrf.mxu0
      %v1444 = vadd.f32 %v608, %v1443
      %v1445 = vpop.f32.mrf.mxu0
      %v1446 = vadd.f32 %v608, %v1445
      %1447 = vdwg.mxu0
      %v1448 = vtanh.pop %v1444
      %v1449 = vtanh.pop %v1446
      %v1452 = vcombine.low %v1448, %v1449
      %1454 = vst [vmem:[%s431] sm:$0xff] %v1452
      %p1455 = scmp.lt.s32.totalorder %s23, 1
      %s1456 = scalar_select %p1455, %s23, 1
      %s1457 = smul.addr %s1456, 2
      %s1458 = smul.addr %s1457, 4
      %s1459 = scalar_lea.vmem %s9, %s1458
      %p1460 = scmp.lt.s32.totalorder %s23, 1
      %s1461 = scalar_select %p1460, %s23, 1
      %s1462 = smul.addr %s1461, 2
      %s1463 = smul.addr %s1462, 8
      %s1464 = scalar_lea.vmem %s10, %s1463
      %p1465 = scmp.lt.s32.totalorder %s23, 1
      %s1466 = scalar_select %p1465, %s23, 1
      %s1467 = smul.addr %s1466, 2
      %s1468 = smul.addr %s1467, 4
      %s1469 = scalar_lea.vmem %s11, %s1468
      // Predicated region
      $region57: #{joint_model_forward.1} parent=55 // pred_check
        %p1470 = pneg %p240
      $region58: #{joint_model_forward.1} parent=55 // pred_check_branch
        %1472 = sbr.rel (%p1470) target = $region60
      $region59: #{joint_model_forward.1} parent=55 // pred_region
        _
      $region60: #{joint_model_forward.1} parent=55 // pred_fallthru
        _
      // Predicated region
      $region61: #{joint_model_forward.1} parent=55 // pred_check
        %p1473 = pneg %p266
      $region62: #{joint_model_forward.1} parent=55 // pred_check_branch
        %1475 = sbr.rel (%p1473) target = $region64
      $region63: #{joint_model_forward.1} parent=55 // pred_region
        _
      $region64: #{joint_model_forward.1} parent=55 // pred_fallthru
        _
      // Predicated region
      $region65: #{joint_model_forward.1} parent=55 // pred_check
        %p1476 = pneg %p292
      $region66: #{joint_model_forward.1} parent=55 // pred_check_branch
        %1478 = sbr.rel (%p1476) target = $region68
      $region67: #{joint_model_forward.1} parent=55 // pred_region
        _
      $region68: #{joint_model_forward.1} parent=55 // pred_fallthru
        _
    $region56: #{joint_model_forward.1} parent=5 // pred_fallthru
      _
    %p1479 = scmp.le.s32.totalorder 2, %s18
    // Predicated region
    $region69: #{joint_model_forward.1} parent=5 // pred_check
      %p1480 = pneg %p1479
    $region70: #{joint_model_forward.1} parent=5 // pred_check_branch
      %1482 = sbr.rel (%p1480) target = $region72
    $region71: #{joint_model_forward.1} parent=5 // pred_region
      %s1483 = ssub.s32 %s18, 2
      // Predicated region
      $region73: #{joint_model_forward.1} parent=71 // pred_check
        %p1484 = pneg %p246
      $region74: #{joint_model_forward.1} parent=71 // pred_check_branch
        %1486 = sbr.rel (%p1484) target = $region76
      $region75: #{joint_model_forward.1} parent=71 // pred_region
        %p1487 = scmp.lt.s32.totalorder %s24, 1
        %s1488 = scalar_select %p1487, %s24, 1
        %s1489 = smul.addr %s1488, 2
        %s1490 = smul.addr %s1489, 4
        %s1491 = scalar_lea.vmem %s9, %s1490
      $region76: #{joint_model_forward.1} parent=71 // pred_fallthru
        _
      // Predicated region
      $region77: #{joint_model_forward.1} parent=71 // pred_check
        %p1492 = pneg %p272
      $region78: #{joint_model_forward.1} parent=71 // pred_check_branch
        %1494 = sbr.rel (%p1492) target = $region80
      $region79: #{joint_model_forward.1} parent=71 // pred_region
        %p1495 = scmp.lt.s32.totalorder %s24, 1
        %s1496 = scalar_select %p1495, %s24, 1
        %s1497 = smul.addr %s1496, 2
        %s1498 = smul.addr %s1497, 8
        %s1499 = scalar_lea.vmem %s10, %s1498
      $region80: #{joint_model_forward.1} parent=71 // pred_fallthru
        _
      // Predicated region
      $region81: #{joint_model_forward.1} parent=71 // pred_check
        %p1500 = pneg %p298
      $region82: #{joint_model_forward.1} parent=71 // pred_check_branch
        %1502 = sbr.rel (%p1500) target = $region84
      $region83: #{joint_model_forward.1} parent=71 // pred_region
        %p1503 = scmp.lt.s32.totalorder %s24, 1
        %s1504 = scalar_select %p1503, %s24, 1
        %s1505 = smul.addr %s1504, 2
        %s1506 = smul.addr %s1505, 4
        %s1507 = scalar_lea.vmem %s11, %s1506
      $region84: #{joint_model_forward.1} parent=71 // pred_fallthru
        _
    $region72: #{joint_model_forward.1} parent=5 // pred_fallthru
      _
  $region6: #{joint_model_forward.1} parent=0 // loop_footer
    %s22 = sadd.s32 1, %s18
  $region7: #{joint_model_forward.1} parent=0 // loop_footer_branch
    %17 = sbr.rel target = $region3
  $region8: #{joint_model_forward.1} parent=0 // loop_exit
    _

</llo_original>
